<compile_context>
chip_gen: v5e
topology: v5e:2x2
jax: 0.10.0
libtpu: 0.0.40
codegen_flags: <defaults>
</compile_context>

<pallas_src>
import functools

import jax
import jax.numpy as jnp
from jax.experimental import pallas as pl
from jax.experimental.pallas import tpu as pltpu

EPS = 1e-5


# ---------------------------------------------------------------------------
# Host-side helpers (generation-aware tiling / VMEM sizing).
# ---------------------------------------------------------------------------
def _vmem_capacity_bytes():
    """Physical VMEM per core (64 MiB v7x, 128 MiB v5e/v6e); safe fallback."""
    try:
        info = pltpu.get_tpu_info()
        for name in ("vmem_capacity_bytes", "vmem_bytes", "vmem_size_bytes"):
            v = getattr(info, name, None)
            if v:
                return int(v)
    except Exception:
        pass
    return 128 << 20


def _compiler_params(semantics, est_bytes, vmem_cap):
    # Scoped-VMEM limit sized from the resident-block estimate, with 16 MiB
    # headroom below physical VMEM for compiler internal scratch (=> <=48 MiB
    # on v7x, <=112 MiB on v5e/v6e).
    limit = max(32 << 20, min(int(est_bytes) + (8 << 20), vmem_cap - (16 << 20)))
    return pltpu.CompilerParams(dimension_semantics=semantics,
                                vmem_limit_bytes=int(limit))


def _pick_block_batch(batch, seq_len, target_rows, fits=None):
    """Largest batch-tile TB (divisor of batch) with TB*S <= target_rows,
    preferring R = batch/TB >= 2 (keeps v7x's 2nd TensorCore busy) and a
    VMEM-feasible estimate."""
    divs = sorted((d for d in range(1, batch + 1) if batch % d == 0), reverse=True)
    for need_r2 in (True, False):
        for d in divs:
            if d * seq_len > target_rows:
                continue
            if need_r2 and batch // d < 2:
                continue
            if fits is not None and not fits(d):
                continue
            return d
    return 1


def _pick_vocab_tile(vocab, target):
    if vocab <= target:
        return vocab
    for tv in range((target // 128) * 128, 0, -128):   # 128-aligned divisors
        if vocab % tv == 0:
            return tv
    # TODO(synk): vocabularies with no 128-aligned divisor (e.g. 50257) should
    # be padded to a multiple of 128 host-side before the head kernel.
    for tv in range(target, 0, -1):
        if vocab % tv == 0:
            return tv
    return vocab


# ---------------------------------------------------------------------------
# In-kernel math helpers (traced inside the Pallas kernels).
# ---------------------------------------------------------------------------
def _layernorm(x, gamma, beta):
    mu = jnp.mean(x, axis=-1, keepdims=True)
    xc = x - mu
    var = jnp.mean(xc * xc, axis=-1, keepdims=True)
    return xc * jax.lax.rsqrt(var + EPS) * gamma + beta


def _gelu_tanh(x):
    c = 0.7978845608028654  # sqrt(2/pi)
    return 0.5 * x * (1.0 + jnp.tanh(c * (x + 0.044715 * (x * x * x))))


# ---------------------------------------------------------------------------
# Pallas kernels.
# ---------------------------------------------------------------------------
def gmlp_blocks_kernel(weights_resident,
                       x_ref, ln1g_ref, ln1b_ref, w1_ref, b1_ref,
                       ln2g_ref, ln2b_ref, wsp_ref, bsp_ref, w2_ref, b2_ref,
                       o_ref):
    """grid = (row_tiles, num_layers); activation accumulates in o_ref, which
    is VMEM-resident across the layer axis (constant block index)."""
    layer = pl.program_id(1)
    # Resident weights hold the full (L, ...) stack -> dynamic layer index;
    # streamed weights arrive as a (1, ...) per-layer block -> static 0.
    widx = layer if weights_resident else 0

    @pl.when(layer == 0)
    def _():
        o_ref[...] = x_ref[...]

    xb = o_ref[...]                                 # (TB, S, D) f32
    tb, s, d = xb.shape
    x2 = xb.reshape(tb * s, d)                      # rows for the MXU

    # proj_1: LayerNorm -> Linear(d_model, d_ffn) -> GELU
    h = _layernorm(x2, ln1g_ref[widx], ln1b_ref[widx])
    h = jnp.dot(h.astype(jnp.bfloat16), w1_ref[widx],
                preferred_element_type=jnp.float32) + b1_ref[widx]
    h = _gelu_tanh(h)                               # (TB*S, F) f32

    # Spatial gating unit: shared W_spatial (S,S), no broadcast materialization;
    # static unroll over the (small) batch tile keeps every dot a plain 2-D MXU op.
    half = h.shape[-1] // 2
    u = h[:, :half]                                 # (TB*S, F/2) f32
    v = _layernorm(h[:, half:], ln2g_ref[widx], ln2b_ref[widx]).astype(jnp.bfloat16)
    wsp = wsp_ref[widx]                             # (S, S)  bf16
    bsp = bsp_ref[widx]                             # (S, 1)  f32
    gated_parts = []
    for bb in range(tb):                            # static (trace-time) unroll
        v_b = v[bb * s:(bb + 1) * s, :]             # (S, F/2) bf16
        sp_b = jnp.dot(wsp, v_b, preferred_element_type=jnp.float32) + bsp
        gated_parts.append(u[bb * s:(bb + 1) * s, :] * sp_b)
    gated = gated_parts[0] if tb == 1 else jnp.concatenate(gated_parts, axis=0)

    # proj_2 + residual
    out = jnp.dot(gated.astype(jnp.bfloat16), w2_ref[widx],
                  preferred_element_type=jnp.float32) + b2_ref[widx]
    o_ref[...] = xb + out.reshape(tb, s, d)


def lm_head_kernel(x_ref, w_ref, b_ref, o_ref, m_sc, l_sc):
    """grid = (row_tiles, 2, vocab_tiles).
    Sweep p==0: online logsumexp over vocab tiles (no HBM logits traffic).
    Sweep p==1: recompute the logits tile and write log-probs directly."""
    p = pl.program_id(1)
    j = pl.program_id(2)
    nv = pl.num_programs(2)

    @pl.when(jnp.logical_and(p == 0, j == 0))
    def _():
        m_sc[...] = jnp.full_like(m_sc[...], -jnp.inf)
        l_sc[...] = jnp.zeros_like(l_sc[...])

    xb = x_ref[...]                                 # (TB, S, D) f32
    tb, s, d = xb.shape
    x2 = xb.reshape(tb * s, d).astype(jnp.bfloat16)
    logits = jnp.dot(x2, w_ref[...],
                     preferred_element_type=jnp.float32) + b_ref[...]

    @pl.when(p == 0)
    def _():
        m_prev = m_sc[...]                          # (TB*S, 1)
        m_new = jnp.maximum(m_prev, jnp.max(logits, axis=-1, keepdims=True))
        l_sc[...] = (l_sc[...] * jnp.exp(m_prev - m_new)
                     + jnp.sum(jnp.exp(logits - m_new), axis=-1, keepdims=True))
        m_sc[...] = m_new

    @pl.when(jnp.logical_and(p == 0, j == nv - 1))
    def _():
        m_sc[...] = m_sc[...] + jnp.log(l_sc[...])  # m_sc now holds lse

    @pl.when(p == 1)
    def _():
        o_ref[...] = (logits - m_sc[...]).reshape(o_ref.shape)


# ---------------------------------------------------------------------------
# pallas_call wrappers.
# ---------------------------------------------------------------------------
def gmlp_blocks_call(x, params):
    B, S, D = x.shape
    L = params['w1'].shape[0]
    F = params['w1'].shape[2]

    names = ('ln1_g', 'ln1_b', 'w1', 'b1', 'ln2_g', 'ln2_b',
             'w_sp', 'b_sp', 'w2', 'b2')
    weights = [params[n] for n in names]

    cap = _vmem_capacity_bytes()
    budget = cap - (16 << 20)
    target_rows = 256 if cap <= (96 << 20) else 512

    full_w_bytes = sum(int(w.size) * w.dtype.itemsize for w in weights)
    layer_w_bytes = sum((int(w.size) // L) * w.dtype.itemsize for w in weights)
    # Keep the full stack VMEM-resident (fetched once for the whole grid) if it
    # fits comfortably; otherwise stream per-layer blocks (re-fetched per tile).
    weights_resident = (2 * full_w_bytes) <= min(budget // 3, 32 << 20)
    w_bytes = 2 * (full_w_bytes if weights_resident else layer_w_bytes)

    def est(tb):
        rows = tb * S
        return (4 * rows * D * 4          # x + o blocks, double-buffered
                + 4 * rows * F * 4        # h / u / v / gated f32 + bf16 temps
                + w_bytes)

    TB = _pick_block_batch(B, S, target_rows, fits=lambda d: est(d) <= budget)
    R = B // TB

    if weights_resident:
        w_specs = [pl.BlockSpec(w.shape, lambda i, l: (0, 0, 0)) for w in weights]
    else:
        w_specs = [pl.BlockSpec((1,) + w.shape[1:], lambda i, l: (l, 0, 0))
                   for w in weights]

    return pl.pallas_call(
        functools.partial(gmlp_blocks_kernel, weights_resident),
        out_shape=jax.ShapeDtypeStruct((B, S, D), jnp.float32),
        grid=(R, L),
        in_specs=[pl.BlockSpec((TB, S, D), lambda i, l: (i, 0, 0))] + w_specs,
        out_specs=pl.BlockSpec((TB, S, D), lambda i, l: (i, 0, 0)),
        compiler_params=_compiler_params(("parallel", "arbitrary"), est(TB), cap),
    )(x, *weights)


def lm_head_call(x, w, b):
    B, S, D = x.shape
    V = w.shape[1]

    cap = _vmem_capacity_bytes()
    budget = cap - (16 << 20)
    target_rows = 256 if cap <= (96 << 20) else 512
    target_tv = 1024 if cap <= (96 << 20) else 2048

    TV = _pick_vocab_tile(V, target_tv)
    NV = V // TV

    def est(tb):
        rows = tb * S
        return (2 * rows * D * 4                              # x block (x2)
                + 2 * (D * TV * w.dtype.itemsize + TV * 4)    # w + b blocks (x2)
                + 2 * rows * TV * 4                           # output block (x2)
                + rows * TV * 4                               # in-kernel logits
                + 4 * rows * 4)                               # m/l scratch

    TB = _pick_block_batch(B, S, target_rows, fits=lambda d: est(d) <= budget)
    R = B // TB

    # TODO(synk): on v5e, consider pipeline_mode=pl.Buffered(3) on the weight
    # stream if profiling shows exposed DMA on the (D, TV) blocks.
    return pl.pallas_call(
        lm_head_kernel,
        out_shape=jax.ShapeDtypeStruct((B, S, V), jnp.float32),
        grid=(R, 2, NV),
        in_specs=[pl.BlockSpec((TB, S, D), lambda i, p, j: (i, 0, 0)),
                  pl.BlockSpec((D, TV), lambda i, p, j: (0, j)),
                  pl.BlockSpec((1, TV), lambda i, p, j: (0, j))],
        # During the lse sweep (p==0) the output block index is pinned to 0 and
        # never written; it is only written (then flushed) during sweep p==1.
        out_specs=pl.BlockSpec((TB, S, TV), lambda i, p, j: (i, 0, j * p)),
        scratch_shapes=[pltpu.VMEM((TB * S, 1), jnp.float32),
                        pltpu.VMEM((TB * S, 1), jnp.float32)],
        compiler_params=_compiler_params(("parallel", "arbitrary", "arbitrary"),
                                         est(TB), cap),
    )(x, w, b)


# ---------------------------------------------------------------------------
# Parameter construction (deterministic, synthetic) + full forward.
# ---------------------------------------------------------------------------
def sinusoidal_pos_encoding(seq_len, d_model):
    pos = jnp.arange(seq_len, dtype=jnp.float32)[:, None]
    i = jnp.arange(d_model, dtype=jnp.float32)[None, :]
    angle = pos / jnp.power(10000.0, (2.0 * jnp.floor(i / 2.0)) / d_model)
    pe = jnp.where((jnp.arange(d_model) % 2) == 0, jnp.sin(angle), jnp.cos(angle))
    return pe.astype(jnp.float32)                   # (S, D)


def init_params(key, vocab_size, d_model, d_ffn, seq_len, num_layers):
    half = d_ffn // 2

    def uniform(k, shape, fan_in, dtype=jnp.float32):
        bound = 1.0 / jnp.sqrt(float(fan_in))
        return jax.random.uniform(k, shape, jnp.float32, -bound, bound).astype(dtype)

    keys = jax.random.split(key, 4 * num_layers + 4)
    params = {
        'embed_table': jax.random.normal(keys[0], (vocab_size, d_model), jnp.float32) * 0.02,
        'pos_enc': sinusoidal_pos_encoding(seq_len, d_model),
        # LayerNorm params and biases stay f32 (added post f32 accumulation).
        'ln1_g': jnp.ones((num_layers, 1, d_model), jnp.float32),
        'ln1_b': jnp.zeros((num_layers, 1, d_model), jnp.float32),
        'ln2_g': jnp.ones((num_layers, 1, half), jnp.float32),
        'ln2_b': jnp.zeros((num_layers, 1, half), jnp.float32),
        'b2': jnp.zeros((num_layers, 1, d_model), jnp.float32),
        # SpatialGatingUnit: near-zero weight, bias init = 1.0 (as in module)
        'b_sp': jnp.ones((num_layers, seq_len, 1), jnp.float32),
    }
    w1, b1, wsp, w2 = [], [], [], []
    for l in range(num_layers):
        k1, k2, k3, k4 = keys[1 + 4 * l: 1 + 4 * l + 4]
        w1.append(uniform(k1, (d_model, d_ffn), d_model, jnp.bfloat16))
        b1.append(uniform(k2, (1, d_ffn), d_model))
        wsp.append((jax.random.normal(k3, (seq_len, seq_len), jnp.float32) * 0.01
                    ).astype(jnp.bfloat16))
        w2.append(uniform(k4, (half, d_model), half, jnp.bfloat16))
    params['w1'] = jnp.stack(w1)
    params['b1'] = jnp.stack(b1)
    params['w_sp'] = jnp.stack(wsp)
    params['w2'] = jnp.stack(w2)
    params['head_w'] = uniform(keys[-2], (d_model, vocab_size), d_model, jnp.bfloat16)
    params['head_b'] = uniform(keys[-1], (1, vocab_size), d_model)
    return params


@functools.partial(jax.jit, static_argnames=('output_logits',))
def gmlp_language_model(token_ids, params, output_logits=True):
    seq_len = token_ids.shape[1]
    # TransformerEmbedding: token-embedding gather + positional encoding (glue).
    x = params['embed_table'][token_ids] + params['pos_enc'][None, :seq_len, :]
    x = x.astype(jnp.float32)
    x = gmlp_blocks_call(x, params)                 # all gMLP layers, one kernel
    if output_logits:
        x = lm_head_call(x, params['head_w'], params['head_b'])
    return x


if __name__ == "__main__":
    # Small but lane-dense demo shapes (last dims multiples of 128).
    VOCAB, D_MODEL, D_FFN, SEQ_LEN, NUM_LAYERS = 1024, 128, 256, 16, 2
    BATCH = 4

    key = jax.random.PRNGKey(0)
    k_tok, k_par = jax.random.split(key)
    token_ids = jax.random.randint(k_tok, (BATCH, SEQ_LEN), 0, VOCAB, dtype=jnp.int32)
    params = init_params(k_par, VOCAB, D_MODEL, D_FFN, SEQ_LEN, NUM_LAYERS)

    out = gmlp_language_model(token_ids, params, output_logits=True)
    out = jax.block_until_ready(out)

    assert out.shape == (BATCH, SEQ_LEN, VOCAB)
    assert bool(jnp.all(jnp.isfinite(out)))
    # log-softmax sanity: each row should sum to ~1 in probability space.
    probs_sum = jnp.sum(jnp.exp(out), axis=-1)
    assert bool(jnp.all(jnp.abs(probs_sum - 1.0) < 1e-3))
    print("KERNEL_OK")
</pallas_src>

<mosaic_0001>
module attributes {stable_mosaic.version = 11 : i64} {
  func.func @lm_head_kernel(%arg0: i32, %arg1: i32, %arg2: i32, %arg3: memref<2x16x128xf32, #tpu.memory_space<vmem>>, %arg4: memref<128x1024xbf16, #tpu.memory_space<vmem>>, %arg5: memref<1x1024xf32, #tpu.memory_space<vmem>>, %arg6: memref<2x16x1024xf32, #tpu.memory_space<vmem>>, %arg7: memref<32x1xf32, #tpu.memory_space<vmem>>, %arg8: memref<32x1xf32, #tpu.memory_space<vmem>>) attributes {dimension_semantics = [#tpu.dimension_semantics<parallel>, #tpu.dimension_semantics<arbitrary>, #tpu.dimension_semantics<arbitrary>], iteration_bounds = array<i64: 2, 2, 1>, scalar_prefetch = 0 : i64, scratch_operands = 2 : i64, tpu.core_type = #tpu.core_type<tc>, window_params = [{transform_indices = @transform_0, window_bounds = array<i64: 2, 16, 128>}, {transform_indices = @transform_1, window_bounds = array<i64: 128, 1024>}, {transform_indices = @transform_2, window_bounds = array<i64: 1, 1024>}, {transform_indices = @transform_3, window_bounds = array<i64: 2, 16, 1024>}]} {
    %c0_i32 = arith.constant 0 : i32
    %0 = arith.cmpi eq, %arg1, %c0_i32 : i32
    %c0_i32_0 = arith.constant 0 : i32
    %1 = arith.cmpi eq, %arg2, %c0_i32_0 : i32
    %2 = arith.andi %0, %1 : i1
    %3 = arith.extui %2 : i1 to i32
    %c0_i32_1 = arith.constant 0 : i32
    %4 = arith.cmpi ne, %3, %c0_i32_1 : i32
    scf.if %4 {
      %cst_14 = arith.constant 0xFF800000 : f32
      %24 = vector.broadcast %cst_14 : f32 to vector<32x1xf32>
      %c0_15 = arith.constant 0 : index
      %c0_16 = arith.constant 0 : index
      %25 = vector.load %arg7[%c0_15, %c0_16] : memref<32x1xf32, #tpu.memory_space<vmem>>, vector<32x1xf32>
      tpu.vector_store %arg7[%c0_15, %c0_16], %24 {strides = array<i32>} : memref<32x1xf32, #tpu.memory_space<vmem>>, vector<32x1xf32>,
      %cst_17 = arith.constant 0.000000e+00 : f32
      %26 = vector.broadcast %cst_17 : f32 to vector<32x1xf32>
      %c0_18 = arith.constant 0 : index
      %c0_19 = arith.constant 0 : index
      %27 = vector.load %arg8[%c0_18, %c0_19] : memref<32x1xf32, #tpu.memory_space<vmem>>, vector<32x1xf32>
      tpu.vector_store %arg8[%c0_18, %c0_19], %26 {strides = array<i32>} : memref<32x1xf32, #tpu.memory_space<vmem>>, vector<32x1xf32>,
    } else {
    }
    %c0 = arith.constant 0 : index
    %c0_2 = arith.constant 0 : index
    %c0_3 = arith.constant 0 : index
    %5 = vector.load %arg3[%c0, %c0_2, %c0_3] : memref<2x16x128xf32, #tpu.memory_space<vmem>>, vector<2x16x128xf32>
    %6 = vector.shape_cast %5 : vector<2x16x128xf32> to vector<32x128xf32>
    %7 = arith.truncf %6 : vector<32x128xf32> to vector<32x128xbf16>
    %c0_4 = arith.constant 0 : index
    %c0_5 = arith.constant 0 : index
    %8 = vector.load %arg4[%c0_4, %c0_5] : memref<128x1024xbf16, #tpu.memory_space<vmem>>, vector<128x1024xbf16>
    %cst = arith.constant dense<0.000000e+00> : vector<32x1024xf32>
    %9 = tpu.matmul %7, %8, %cst {dimension_numbers = #tpu.dot_dimension_numbers<[1], [0], [0], [1], [0, 0, 1, 1], [], []>} : vector<32x128xbf16>, vector<128x1024xbf16>, vector<32x1024xf32> -> vector<32x1024xf32>
    %c0_6 = arith.constant 0 : index
    %c0_7 = arith.constant 0 : index
    %10 = vector.load %arg5[%c0_6, %c0_7] : memref<1x1024xf32, #tpu.memory_space<vmem>>, vector<1x1024xf32>
    %11 = vector.broadcast %10 : vector<1x1024xf32> to vector<32x1024xf32>
    %12 = arith.addf %9, %11 : vector<32x1024xf32>
    %c0_i32_8 = arith.constant 0 : i32
    %13 = arith.cmpi eq, %arg1, %c0_i32_8 : i32
    %14 = arith.extui %13 : i1 to i32
    %c0_i32_9 = arith.constant 0 : i32
    %15 = arith.cmpi ne, %14, %c0_i32_9 : i32
    scf.if %15 {
      %c0_14 = arith.constant 0 : index
      %c0_15 = arith.constant 0 : index
      %24 = vector.load %arg7[%c0_14, %c0_15] : memref<32x1xf32, #tpu.memory_space<vmem>>, vector<32x1xf32>
      %cst_16 = arith.constant dense<0xFF800000> : vector<32xf32>
      %25 = vector.multi_reduction <maximumf>, %12, %cst_16 [1] : vector<32x1024xf32> to vector<32xf32>
      %26 = vector.shape_cast %25 : vector<32xf32> to vector<32x1xf32>
      %27 = arith.maximumf %24, %26 : vector<32x1xf32>
      %c0_17 = arith.constant 0 : index
      %c0_18 = arith.constant 0 : index
      %28 = vector.load %arg8[%c0_17, %c0_18] : memref<32x1xf32, #tpu.memory_space<vmem>>, vector<32x1xf32>
      %29 = arith.subf %24, %27 : vector<32x1xf32>
      %30 = math.exp %29 : vector<32x1xf32>
      %31 = arith.mulf %28, %30 : vector<32x1xf32>
      %32 = vector.broadcast %27 : vector<32x1xf32> to vector<32x1024xf32>
      %33 = arith.subf %12, %32 : vector<32x1024xf32>
      %34 = math.exp %33 : vector<32x1024xf32>
      %cst_19 = arith.constant dense<0.000000e+00> : vector<32xf32>
      %35 = vector.multi_reduction <add>, %34, %cst_19 [1] : vector<32x1024xf32> to vector<32xf32>
      %36 = vector.shape_cast %35 : vector<32xf32> to vector<32x1xf32>
      %37 = arith.addf %31, %36 : vector<32x1xf32>
      %c0_20 = arith.constant 0 : index
      %c0_21 = arith.constant 0 : index
      %38 = vector.load %arg8[%c0_20, %c0_21] : memref<32x1xf32, #tpu.memory_space<vmem>>, vector<32x1xf32>
      tpu.vector_store %arg8[%c0_20, %c0_21], %37 {strides = array<i32>} : memref<32x1xf32, #tpu.memory_space<vmem>>, vector<32x1xf32>,
      %c0_22 = arith.constant 0 : index
      %c0_23 = arith.constant 0 : index
      %39 = vector.load %arg7[%c0_22, %c0_23] : memref<32x1xf32, #tpu.memory_space<vmem>>, vector<32x1xf32>
      tpu.vector_store %arg7[%c0_22, %c0_23], %27 {strides = array<i32>} : memref<32x1xf32, #tpu.memory_space<vmem>>, vector<32x1xf32>,
    } else {
    }
    %c0_i32_10 = arith.constant 0 : i32
    %16 = arith.cmpi eq, %arg1, %c0_i32_10 : i32
    %c0_i32_11 = arith.constant 0 : i32
    %17 = arith.cmpi eq, %arg2, %c0_i32_11 : i32
    %18 = arith.andi %16, %17 : i1
    %19 = arith.extui %18 : i1 to i32
    %c0_i32_12 = arith.constant 0 : i32
    %20 = arith.cmpi ne, %19, %c0_i32_12 : i32
    scf.if %20 {
      %c0_14 = arith.constant 0 : index
      %c0_15 = arith.constant 0 : index
      %24 = vector.load %arg7[%c0_14, %c0_15] : memref<32x1xf32, #tpu.memory_space<vmem>>, vector<32x1xf32>
      %c0_16 = arith.constant 0 : index
      %c0_17 = arith.constant 0 : index
      %25 = vector.load %arg8[%c0_16, %c0_17] : memref<32x1xf32, #tpu.memory_space<vmem>>, vector<32x1xf32>
      %26 = math.log %25 : vector<32x1xf32>
      %27 = arith.addf %24, %26 : vector<32x1xf32>
      %c0_18 = arith.constant 0 : index
      %c0_19 = arith.constant 0 : index
      %28 = vector.load %arg7[%c0_18, %c0_19] : memref<32x1xf32, #tpu.memory_space<vmem>>, vector<32x1xf32>
      tpu.vector_store %arg7[%c0_18, %c0_19], %27 {strides = array<i32>} : memref<32x1xf32, #tpu.memory_space<vmem>>, vector<32x1xf32>,
    } else {
    }
    %c1_i32 = arith.constant 1 : i32
    %21 = arith.cmpi eq, %arg1, %c1_i32 : i32
    %22 = arith.extui %21 : i1 to i32
    %c0_i32_13 = arith.constant 0 : i32
    %23 = arith.cmpi ne, %22, %c0_i32_13 : i32
    scf.if %23 {
      %c0_14 = arith.constant 0 : index
      %c0_15 = arith.constant 0 : index
      %24 = vector.load %arg7[%c0_14, %c0_15] : memref<32x1xf32, #tpu.memory_space<vmem>>, vector<32x1xf32>
      %25 = vector.broadcast %24 : vector<32x1xf32> to vector<32x1024xf32>
      %26 = arith.subf %12, %25 : vector<32x1024xf32>
      %27 = vector.shape_cast %26 : vector<32x1024xf32> to vector<2x16x1024xf32>
      %c0_16 = arith.constant 0 : index
      %c0_17 = arith.constant 0 : index
      %c0_18 = arith.constant 0 : index
      %28 = vector.load %arg6[%c0_16, %c0_17, %c0_18] : memref<2x16x1024xf32, #tpu.memory_space<vmem>>, vector<2x16x1024xf32>
      tpu.vector_store %arg6[%c0_16, %c0_17, %c0_18], %27 {strides = array<i32>} : memref<2x16x1024xf32, #tpu.memory_space<vmem>>, vector<2x16x1024xf32>,
    } else {
    }
    return
  }
  func.func @transform_0(%arg0: i32, %arg1: i32, %arg2: i32) -> (i32, i32, i32) {
    %c0_i32 = arith.constant 0 : i32
    %c0_i32_0 = arith.constant 0 : i32
    %c0_i32_1 = arith.constant 0 : i32
    return %arg0, %c0_i32, %c0_i32_0 : i32, i32, i32
  }
  func.func @transform_1(%arg0: i32, %arg1: i32, %arg2: i32) -> (i32, i32) {
    %c0_i32 = arith.constant 0 : i32
    %c0_i32_0 = arith.constant 0 : i32
    return %c0_i32, %arg2 : i32, i32
  }
  func.func @transform_2(%arg0: i32, %arg1: i32, %arg2: i32) -> (i32, i32) {
    %c0_i32 = arith.constant 0 : i32
    %c0_i32_0 = arith.constant 0 : i32
    return %c0_i32, %arg2 : i32, i32
  }
  func.func @transform_3(%arg0: i32, %arg1: i32, %arg2: i32) -> (i32, i32, i32) {
    %0 = arith.muli %arg2, %arg1 : i32
    %c0_i32 = arith.constant 0 : i32
    %c0_i32_0 = arith.constant 0 : i32
    return %arg0, %c0_i32, %0 : i32, i32, i32
  }
}

module attributes {stable_mosaic.version = 11 : i64} {
  func.func @gmlp_blocks_kernel(%arg0: i32, %arg1: i32, %arg2: memref<2x16x128xf32, #tpu.memory_space<vmem>>, %arg3: memref<2x1x128xf32, #tpu.memory_space<vmem>>, %arg4: memref<2x1x128xf32, #tpu.memory_space<vmem>>, %arg5: memref<2x128x256xbf16, #tpu.memory_space<vmem>>, %arg6: memref<2x1x256xf32, #tpu.memory_space<vmem>>, %arg7: memref<2x1x128xf32, #tpu.memory_space<vmem>>, %arg8: memref<2x1x128xf32, #tpu.memory_space<vmem>>, %arg9: memref<2x16x16xbf16, #tpu.memory_space<vmem>>, %arg10: memref<2x16x1xf32, #tpu.memory_space<vmem>>, %arg11: memref<2x128x128xbf16, #tpu.memory_space<vmem>>, %arg12: memref<2x1x128xf32, #tpu.memory_space<vmem>>, %arg13: memref<2x16x128xf32, #tpu.memory_space<vmem>>) attributes {dimension_semantics = [#tpu.dimension_semantics<parallel>, #tpu.dimension_semantics<arbitrary>], iteration_bounds = array<i64: 2, 2>, scalar_prefetch = 0 : i64, scratch_operands = 0 : i64, tpu.core_type = #tpu.core_type<tc>, window_params = [{transform_indices = @transform_0, window_bounds = array<i64: 2, 16, 128>}, {pipeline_mode = #tpu.pipeline_mode<synchronous>, transform_indices = @transform_1, window_bounds = array<i64: 2, 1, 128>}, {pipeline_mode = #tpu.pipeline_mode<synchronous>, transform_indices = @transform_2, window_bounds = array<i64: 2, 1, 128>}, {pipeline_mode = #tpu.pipeline_mode<synchronous>, transform_indices = @transform_3, window_bounds = array<i64: 2, 128, 256>}, {pipeline_mode = #tpu.pipeline_mode<synchronous>, transform_indices = @transform_4, window_bounds = array<i64: 2, 1, 256>}, {pipeline_mode = #tpu.pipeline_mode<synchronous>, transform_indices = @transform_5, window_bounds = array<i64: 2, 1, 128>}, {pipeline_mode = #tpu.pipeline_mode<synchronous>, transform_indices = @transform_6, window_bounds = array<i64: 2, 1, 128>}, {pipeline_mode = #tpu.pipeline_mode<synchronous>, transform_indices = @transform_7, window_bounds = array<i64: 2, 16, 16>}, {pipeline_mode = #tpu.pipeline_mode<synchronous>, transform_indices = @transform_8, window_bounds = array<i64: 2, 16, 1>}, {pipeline_mode = #tpu.pipeline_mode<synchronous>, transform_indices = @transform_9, window_bounds = array<i64: 2, 128, 128>}, {pipeline_mode = #tpu.pipeline_mode<synchronous>, transform_indices = @transform_10, window_bounds = array<i64: 2, 1, 128>}, {transform_indices = @transform_11, window_bounds = array<i64: 2, 16, 128>}]} {
    %c0_i32 = arith.constant 0 : i32
    %0 = arith.cmpi eq, %arg1, %c0_i32 : i32
    %1 = arith.extui %0 : i1 to i32
    %c0_i32_0 = arith.constant 0 : i32
    %2 = arith.cmpi ne, %1, %c0_i32_0 : i32
    scf.if %2 {
      %c0_43 = arith.constant 0 : index
      %c0_44 = arith.constant 0 : index
      %c0_45 = arith.constant 0 : index
      %115 = vector.load %arg2[%c0_43, %c0_44, %c0_45] : memref<2x16x128xf32, #tpu.memory_space<vmem>>, vector<2x16x128xf32>
      %c0_46 = arith.constant 0 : index
      %c0_47 = arith.constant 0 : index
      %c0_48 = arith.constant 0 : index
      %116 = vector.load %arg13[%c0_46, %c0_47, %c0_48] : memref<2x16x128xf32, #tpu.memory_space<vmem>>, vector<2x16x128xf32>
      tpu.vector_store %arg13[%c0_46, %c0_47, %c0_48], %115 {strides = array<i32>} : memref<2x16x128xf32, #tpu.memory_space<vmem>>, vector<2x16x128xf32>,
    } else {
    }
    %c0 = arith.constant 0 : index
    %c0_1 = arith.constant 0 : index
    %c0_2 = arith.constant 0 : index
    %3 = vector.load %arg13[%c0, %c0_1, %c0_2] : memref<2x16x128xf32, #tpu.memory_space<vmem>>, vector<2x16x128xf32>
    %4 = vector.shape_cast %3 : vector<2x16x128xf32> to vector<32x128xf32>
    %5 = arith.index_cast %arg1 : i32 to index
    %c0_3 = arith.constant 0 : index
    %c0_4 = arith.constant 0 : index
    %6 = vector.load %arg3[%5, %c0_3, %c0_4] : memref<2x1x128xf32, #tpu.memory_space<vmem>>, vector<1x1x128xf32>
    %7 = vector.shape_cast %6 : vector<1x1x128xf32> to vector<1x128xf32>
    %8 = arith.index_cast %arg1 : i32 to index
    %c0_5 = arith.constant 0 : index
    %c0_6 = arith.constant 0 : index
    %9 = vector.load %arg4[%8, %c0_5, %c0_6] : memref<2x1x128xf32, #tpu.memory_space<vmem>>, vector<1x1x128xf32>
    %10 = vector.shape_cast %9 : vector<1x1x128xf32> to vector<1x128xf32>
    %cst = arith.constant dense<0.000000e+00> : vector<32xf32>
    %11 = vector.multi_reduction <add>, %4, %cst [1] : vector<32x128xf32> to vector<32xf32>
    %12 = vector.shape_cast %11 : vector<32xf32> to vector<32x1xf32>
    %cst_7 = arith.constant 1.280000e+02 : f32
    %13 = vector.broadcast %cst_7 : f32 to vector<32x1xf32>
    %14 = arith.divf %12, %13 : vector<32x1xf32>
    %15 = vector.broadcast %14 : vector<32x1xf32> to vector<32x128xf32>
    %16 = arith.subf %4, %15 : vector<32x128xf32>
    %17 = arith.mulf %16, %16 : vector<32x128xf32>
    %cst_8 = arith.constant dense<0.000000e+00> : vector<32xf32>
    %18 = vector.multi_reduction <add>, %17, %cst_8 [1] : vector<32x128xf32> to vector<32xf32>
    %19 = vector.shape_cast %18 : vector<32xf32> to vector<32x1xf32>
    %cst_9 = arith.constant 1.280000e+02 : f32
    %20 = vector.broadcast %cst_9 : f32 to vector<32x1xf32>
    %21 = arith.divf %19, %20 : vector<32x1xf32>
    %cst_10 = arith.constant 9.99999974E-6 : f32
    %22 = vector.broadcast %cst_10 : f32 to vector<32x1xf32>
    %23 = arith.addf %21, %22 : vector<32x1xf32>
    %24 = math.rsqrt %23 : vector<32x1xf32>
    %25 = vector.broadcast %24 : vector<32x1xf32> to vector<32x128xf32>
    %26 = arith.mulf %16, %25 : vector<32x128xf32>
    %27 = vector.broadcast %7 : vector<1x128xf32> to vector<32x128xf32>
    %28 = arith.mulf %26, %27 : vector<32x128xf32>
    %29 = vector.broadcast %10 : vector<1x128xf32> to vector<32x128xf32>
    %30 = arith.addf %28, %29 : vector<32x128xf32>
    %31 = arith.truncf %30 : vector<32x128xf32> to vector<32x128xbf16>
    %32 = arith.index_cast %arg1 : i32 to index
    %c0_11 = arith.constant 0 : index
    %c0_12 = arith.constant 0 : index
    %33 = vector.load %arg5[%32, %c0_11, %c0_12] : memref<2x128x256xbf16, #tpu.memory_space<vmem>>, vector<1x128x256xbf16>
    %34 = vector.shape_cast %33 : vector<1x128x256xbf16> to vector<128x256xbf16>
    %cst_13 = arith.constant dense<0.000000e+00> : vector<32x256xf32>
    %35 = tpu.matmul %31, %34, %cst_13 {dimension_numbers = #tpu.dot_dimension_numbers<[1], [0], [0], [1], [0, 0, 1, 1], [], []>} : vector<32x128xbf16>, vector<128x256xbf16>, vector<32x256xf32> -> vector<32x256xf32>
    %36 = arith.index_cast %arg1 : i32 to index
    %c0_14 = arith.constant 0 : index
    %c0_15 = arith.constant 0 : index
    %37 = vector.load %arg6[%36, %c0_14, %c0_15] : memref<2x1x256xf32, #tpu.memory_space<vmem>>, vector<1x1x256xf32>
    %38 = vector.shape_cast %37 : vector<1x1x256xf32> to vector<1x256xf32>
    %39 = vector.broadcast %38 : vector<1x256xf32> to vector<32x256xf32>
    %40 = arith.addf %35, %39 : vector<32x256xf32>
    %cst_16 = arith.constant 5.000000e-01 : f32
    %41 = vector.broadcast %cst_16 : f32 to vector<32x256xf32>
    %42 = arith.mulf %41, %40 : vector<32x256xf32>
    %43 = arith.mulf %40, %40 : vector<32x256xf32>
    %44 = arith.mulf %43, %40 : vector<32x256xf32>
    %cst_17 = arith.constant 4.471500e-02 : f32
    %45 = vector.broadcast %cst_17 : f32 to vector<32x256xf32>
    %46 = arith.mulf %45, %44 : vector<32x256xf32>
    %47 = arith.addf %40, %46 : vector<32x256xf32>
    %cst_18 = arith.constant 0.797884583 : f32
    %48 = vector.broadcast %cst_18 : f32 to vector<32x256xf32>
    %49 = arith.mulf %48, %47 : vector<32x256xf32>
    %50 = math.tanh %49 : vector<32x256xf32>
    %cst_19 = arith.constant 1.000000e+00 : f32
    %51 = vector.broadcast %cst_19 : f32 to vector<32x256xf32>
    %52 = arith.addf %51, %50 : vector<32x256xf32>
    %53 = arith.mulf %42, %52 : vector<32x256xf32>
    %54 = vector.extract_strided_slice %53 {offsets = [0, 0], sizes = [32, 128], strides = [1, 1]} : vector<32x256xf32> to vector<32x128xf32>
    %55 = vector.extract_strided_slice %53 {offsets = [0, 128], sizes = [32, 128], strides = [1, 1]} : vector<32x256xf32> to vector<32x128xf32>
    %56 = arith.index_cast %arg1 : i32 to index
    %c0_20 = arith.constant 0 : index
    %c0_21 = arith.constant 0 : index
    %57 = vector.load %arg7[%56, %c0_20, %c0_21] : memref<2x1x128xf32, #tpu.memory_space<vmem>>, vector<1x1x128xf32>
    %58 = vector.shape_cast %57 : vector<1x1x128xf32> to vector<1x128xf32>
    %59 = arith.index_cast %arg1 : i32 to index
    %c0_22 = arith.constant 0 : index
    %c0_23 = arith.constant 0 : index
    %60 = vector.load %arg8[%59, %c0_22, %c0_23] : memref<2x1x128xf32, #tpu.memory_space<vmem>>, vector<1x1x128xf32>
    %61 = vector.shape_cast %60 : vector<1x1x128xf32> to vector<1x128xf32>
    %cst_24 = arith.constant dense<0.000000e+00> : vector<32xf32>
    %62 = vector.multi_reduction <add>, %55, %cst_24 [1] : vector<32x128xf32> to vector<32xf32>
    %63 = vector.shape_cast %62 : vector<32xf32> to vector<32x1xf32>
    %cst_25 = arith.constant 1.280000e+02 : f32
    %64 = vector.broadcast %cst_25 : f32 to vector<32x1xf32>
    %65 = arith.divf %63, %64 : vector<32x1xf32>
    %66 = vector.broadcast %65 : vector<32x1xf32> to vector<32x128xf32>
    %67 = arith.subf %55, %66 : vector<32x128xf32>
    %68 = arith.mulf %67, %67 : vector<32x128xf32>
    %cst_26 = arith.constant dense<0.000000e+00> : vector<32xf32>
    %69 = vector.multi_reduction <add>, %68, %cst_26 [1] : vector<32x128xf32> to vector<32xf32>
    %70 = vector.shape_cast %69 : vector<32xf32> to vector<32x1xf32>
    %cst_27 = arith.constant 1.280000e+02 : f32
    %71 = vector.broadcast %cst_27 : f32 to vector<32x1xf32>
    %72 = arith.divf %70, %71 : vector<32x1xf32>
    %cst_28 = arith.constant 9.99999974E-6 : f32
    %73 = vector.broadcast %cst_28 : f32 to vector<32x1xf32>
    %74 = arith.addf %72, %73 : vector<32x1xf32>
    %75 = math.rsqrt %74 : vector<32x1xf32>
    %76 = vector.broadcast %75 : vector<32x1xf32> to vector<32x128xf32>
    %77 = arith.mulf %67, %76 : vector<32x128xf32>
    %78 = vector.broadcast %58 : vector<1x128xf32> to vector<32x128xf32>
    %79 = arith.mulf %77, %78 : vector<32x128xf32>
    %80 = vector.broadcast %61 : vector<1x128xf32> to vector<32x128xf32>
    %81 = arith.addf %79, %80 : vector<32x128xf32>
    %82 = arith.truncf %81 : vector<32x128xf32> to vector<32x128xbf16>
    %83 = arith.index_cast %arg1 : i32 to index
    %c0_29 = arith.constant 0 : index
    %c0_30 = arith.constant 0 : index
    %84 = vector.load %arg9[%83, %c0_29, %c0_30] : memref<2x16x16xbf16, #tpu.memory_space<vmem>>, vector<1x16x16xbf16>
    %85 = vector.shape_cast %84 : vector<1x16x16xbf16> to vector<16x16xbf16>
    %86 = arith.index_cast %arg1 : i32 to index
    %c0_31 = arith.constant 0 : index
    %c0_32 = arith.constant 0 : index
    %87 = vector.load %arg10[%86, %c0_31, %c0_32] : memref<2x16x1xf32, #tpu.memory_space<vmem>>, vector<1x16x1xf32>
    %88 = vector.shape_cast %87 : vector<1x16x1xf32> to vector<16x1xf32>
    %89 = vector.extract_strided_slice %82 {offsets = [0, 0], sizes = [16, 128], strides = [1, 1]} : vector<32x128xbf16> to vector<16x128xbf16>
    %cst_33 = arith.constant dense<0.000000e+00> : vector<16x128xf32>
    %90 = tpu.matmul %85, %89, %cst_33 {dimension_numbers = #tpu.dot_dimension_numbers<[1], [0], [0], [1], [0, 0, 1, 1], [], []>} : vector<16x16xbf16>, vector<16x128xbf16>, vector<16x128xf32> -> vector<16x128xf32>
    %91 = vector.broadcast %88 : vector<16x1xf32> to vector<16x128xf32>
    %92 = arith.addf %90, %91 : vector<16x128xf32>
    %93 = vector.extract_strided_slice %54 {offsets = [0, 0], sizes = [16, 128], strides = [1, 1]} : vector<32x128xf32> to vector<16x128xf32>
    %94 = arith.mulf %93, %92 : vector<16x128xf32>
    %95 = vector.extract_strided_slice %82 {offsets = [16, 0], sizes = [16, 128], strides = [1, 1]} : vector<32x128xbf16> to vector<16x128xbf16>
    %cst_34 = arith.constant dense<0.000000e+00> : vector<16x128xf32>
    %96 = tpu.matmul %85, %95, %cst_34 {dimension_numbers = #tpu.dot_dimension_numbers<[1], [0], [0], [1], [0, 0, 1, 1], [], []>} : vector<16x16xbf16>, vector<16x128xbf16>, vector<16x128xf32> -> vector<16x128xf32>
    %97 = vector.broadcast %88 : vector<16x1xf32> to vector<16x128xf32>
    %98 = arith.addf %96, %97 : vector<16x128xf32>
    %99 = vector.extract_strided_slice %54 {offsets = [16, 0], sizes = [16, 128], strides = [1, 1]} : vector<32x128xf32> to vector<16x128xf32>
    %100 = arith.mulf %99, %98 : vector<16x128xf32>
    %101 = tpu.concatenate %94, %100 in 0 : vector<16x128xf32>, vector<16x128xf32> -> vector<32x128xf32>
    %102 = arith.truncf %101 : vector<32x128xf32> to vector<32x128xbf16>
    %103 = arith.index_cast %arg1 : i32 to index
    %c0_35 = arith.constant 0 : index
    %c0_36 = arith.constant 0 : index
    %104 = vector.load %arg11[%103, %c0_35, %c0_36] : memref<2x128x128xbf16, #tpu.memory_space<vmem>>, vector<1x128x128xbf16>
    %105 = vector.shape_cast %104 : vector<1x128x128xbf16> to vector<128x128xbf16>
    %cst_37 = arith.constant dense<0.000000e+00> : vector<32x128xf32>
    %106 = tpu.matmul %102, %105, %cst_37 {dimension_numbers = #tpu.dot_dimension_numbers<[1], [0], [0], [1], [0, 0, 1, 1], [], []>} : vector<32x128xbf16>, vector<128x128xbf16>, vector<32x128xf32> -> vector<32x128xf32>
    %107 = arith.index_cast %arg1 : i32 to index
    %c0_38 = arith.constant 0 : index
    %c0_39 = arith.constant 0 : index
    %108 = vector.load %arg12[%107, %c0_38, %c0_39] : memref<2x1x128xf32, #tpu.memory_space<vmem>>, vector<1x1x128xf32>
    %109 = vector.shape_cast %108 : vector<1x1x128xf32> to vector<1x128xf32>
    %110 = vector.broadcast %109 : vector<1x128xf32> to vector<32x128xf32>
    %111 = arith.addf %106, %110 : vector<32x128xf32>
    %112 = vector.shape_cast %111 : vector<32x128xf32> to vector<2x16x128xf32>
    %113 = arith.addf %3, %112 : vector<2x16x128xf32>
    %c0_40 = arith.constant 0 : index
    %c0_41 = arith.constant 0 : index
    %c0_42 = arith.constant 0 : index
    %114 = vector.load %arg13[%c0_40, %c0_41, %c0_42] : memref<2x16x128xf32, #tpu.memory_space<vmem>>, vector<2x16x128xf32>
    tpu.vector_store %arg13[%c0_40, %c0_41, %c0_42], %113 {strides = array<i32>} : memref<2x16x128xf32, #tpu.memory_space<vmem>>, vector<2x16x128xf32>,
    return
  }
  func.func @transform_0(%arg0: i32, %arg1: i32) -> (i32, i32, i32) {
    %c0_i32 = arith.constant 0 : i32
    %c0_i32_0 = arith.constant 0 : i32
    %c0_i32_1 = arith.constant 0 : i32
    return %arg0, %c0_i32, %c0_i32_0 : i32, i32, i32
  }
  func.func @transform_1(%arg0: i32, %arg1: i32) -> (i32, i32, i32) {
    %c0_i32 = arith.constant 0 : i32
    %c0_i32_0 = arith.constant 0 : i32
    %c0_i32_1 = arith.constant 0 : i32
    %c0_i32_2 = arith.constant 0 : i32
    return %c0_i32, %c0_i32_0, %c0_i32_1 : i32, i32, i32
  }
  func.func @transform_2(%arg0: i32, %arg1: i32) -> (i32, i32, i32) {
    %c0_i32 = arith.constant 0 : i32
    %c0_i32_0 = arith.constant 0 : i32
    %c0_i32_1 = arith.constant 0 : i32
    %c0_i32_2 = arith.constant 0 : i32
    return %c0_i32, %c0_i32_0, %c0_i32_1 : i32, i32, i32
  }
  func.func @transform_3(%arg0: i32, %arg1: i32) -> (i32, i32, i32) {
    %c0_i32 = arith.constant 0 : i32
    %c0_i32_0 = arith.constant 0 : i32
    %c0_i32_1 = arith.constant 0 : i32
    %c0_i32_2 = arith.constant 0 : i32
    return %c0_i32, %c0_i32_0, %c0_i32_1 : i32, i32, i32
  }
  func.func @transform_4(%arg0: i32, %arg1: i32) -> (i32, i32, i32) {
    %c0_i32 = arith.constant 0 : i32
    %c0_i32_0 = arith.constant 0 : i32
    %c0_i32_1 = arith.constant 0 : i32
    %c0_i32_2 = arith.constant 0 : i32
    return %c0_i32, %c0_i32_0, %c0_i32_1 : i32, i32, i32
  }
  func.func @transform_5(%arg0: i32, %arg1: i32) -> (i32, i32, i32) {
    %c0_i32 = arith.constant 0 : i32
    %c0_i32_0 = arith.constant 0 : i32
    %c0_i32_1 = arith.constant 0 : i32
    %c0_i32_2 = arith.constant 0 : i32
    return %c0_i32, %c0_i32_0, %c0_i32_1 : i32, i32, i32
  }
  func.func @transform_6(%arg0: i32, %arg1: i32) -> (i32, i32, i32) {
    %c0_i32 = arith.constant 0 : i32
    %c0_i32_0 = arith.constant 0 : i32
    %c0_i32_1 = arith.constant 0 : i32
    %c0_i32_2 = arith.constant 0 : i32
    return %c0_i32, %c0_i32_0, %c0_i32_1 : i32, i32, i32
  }
  func.func @transform_7(%arg0: i32, %arg1: i32) -> (i32, i32, i32) {
    %c0_i32 = arith.constant 0 : i32
    %c0_i32_0 = arith.constant 0 : i32
    %c0_i32_1 = arith.constant 0 : i32
    %c0_i32_2 = arith.constant 0 : i32
    return %c0_i32, %c0_i32_0, %c0_i32_1 : i32, i32, i32
  }
  func.func @transform_8(%arg0: i32, %arg1: i32) -> (i32, i32, i32) {
    %c0_i32 = arith.constant 0 : i32
    %c0_i32_0 = arith.constant 0 : i32
    %c0_i32_1 = arith.constant 0 : i32
    %c0_i32_2 = arith.constant 0 : i32
    return %c0_i32, %c0_i32_0, %c0_i32_1 : i32, i32, i32
  }
  func.func @transform_9(%arg0: i32, %arg1: i32) -> (i32, i32, i32) {
    %c0_i32 = arith.constant 0 : i32
    %c0_i32_0 = arith.constant 0 : i32
    %c0_i32_1 = arith.constant 0 : i32
    %c0_i32_2 = arith.constant 0 : i32
    return %c0_i32, %c0_i32_0, %c0_i32_1 : i32, i32, i32
  }
  func.func @transform_10(%arg0: i32, %arg1: i32) -> (i32, i32, i32) {
    %c0_i32 = arith.constant 0 : i32
    %c0_i32_0 = arith.constant 0 : i32
    %c0_i32_1 = arith.constant 0 : i32
    %c0_i32_2 = arith.constant 0 : i32
    return %c0_i32, %c0_i32_0, %c0_i32_1 : i32, i32, i32
  }
  func.func @transform_11(%arg0: i32, %arg1: i32) -> (i32, i32, i32) {
    %c0_i32 = arith.constant 0 : i32
    %c0_i32_0 = arith.constant 0 : i32
    %c0_i32_1 = arith.constant 0 : i32
    return %arg0, %c0_i32, %c0_i32_0 : i32, i32, i32
  }
}

</mosaic_0001>

<llo_original>
// kernel: gmlp_language_model.3
$region0: #{gmlp_language_model.3}
  #allocation0 [shape = 'u32[]', space=smem, size = 0x4, offset = 0x4, fixed_abs, tag = 'smem constant byte address 0x4 - core index']
  #allocation1 [shape = 'u32[72,128]{1,0:T(1,128)}', space=vmem, size = 0x9000, scoped, tag = 'internal scratch']
  #allocation2 [shape = 'f32[32,1]{1,0:T(8,128)}', space=vmem, size = 0x4000, scoped, tag = 'scratch operand']
  #allocation3 [shape = 'f32[32,1]{1,0:T(8,128)}', space=vmem, size = 0x4000, scoped, tag = 'scratch operand']
  %s0 = inlined_call_operand.vmem [shape: f32[4,16,128], index: 0, kind: input, shape index: {}]
  %s1 = inlined_call_operand.vmem [shape: bf16[128,1024], index: 1, kind: input, shape index: {}]
  %s2 = inlined_call_operand.vmem [shape: f32[1,1024], index: 2, kind: input, shape index: {}]
  %s3 = inlined_call_operand.hbm [shape: f32[4,16,1024], index: 3, kind: output, shape index: {}]
  %s4 = sld [smem:[#allocation0]]
  $region61: #{gmlp_language_model.3} parent=0
    _
  %s6 = ssub.s32 1, %s4
  %s7 = scalar_select 0, %s6, %s4
  $region1: #{gmlp_language_model.3} parent=0
    #allocation4 [shape = 'u8[262144]{0}', space=vmem, size = 0x40000, scoped, tag = 'output window, operand 0']
    #allocation5 [shape = 's32[2]{0}', space=sflag, size = 0x8, scoped, tag = 'scoped memory for gmlp_language_model.3']
    %8 = vsyncpa [#allocation5], 0
    %s9 = scalar_lea.sflag [#allocation5], 1
    %10 = vsyncpa %s9, 0
    loop: start=0, step=1, limit=6
    $region2: #{gmlp_language_model.3} parent=1 // loop_pre_header
      _
    $region3: #{gmlp_language_model.3} parent=1 // loop_header
      %s12 = sphi 0, %s16
      %p13 = scmp.ge.s32.totalorder %s12, 6
      %s19 = sphi 0, %s38
      %s20 = sphi 0, %s34
      %s21 = sphi 0, %s30
      %s22 = sphi 0, %s19
      %s23 = sphi 0, %s20
      %s24 = sphi 0, %s21
      %s25 = sphi 0, %s22
      %s26 = sphi 0, %s23
      %s27 = sphi 0, %s24
      %s41 = sphi 0, %s43
      %s44 = sphi 0, %s41
      %s45 = sphi 0, %s44
      %s61 = sphi 0, %s45
      %s67 = sphi 0, %s69
      %s70 = sphi 0, %s67
      %s71 = sphi 0, %s70
      %s87 = sphi 0, %s71
      %s93 = sphi 0, %s95
      %s96 = sphi 0, %s93
      %s97 = sphi 0, %s96
      %s113 = sphi 0, %s97
      %s123 = sphi 0, %s125
      %s126 = sphi 0, %s123
      %s127 = sphi 0, %s126
      %s143 = sphi 0, %s127
    $region4: #{gmlp_language_model.3} parent=1 // loop_header_branch
      %15 = sbr.rel (%p13) target = $region8
    $region5: #{gmlp_language_model.3} parent=1 // loop_body
      %s17 = ssub.s32 %s12, 1
      %s18 = ssub.s32 %s12, 2
      %s28 = sadd.s32 1, %s21
      %p29 = scmp.ge.s32.totalorder %s28, 1
      %s30 = scalar_select %p29, 0, %s28
      %s31 = sadd.s32 1, %s20
      %s32 = scalar_select %p29, %s31, %s20
      %p33 = scmp.ge.s32.totalorder %s32, 2
      %s34 = scalar_select %p33, 0, %s32
      %s35 = sadd.s32 1, %s19
      %s36 = scalar_select %p33, %s35, %s19
      %p37 = scmp.ge.s32.totalorder %s36, 2
      %s38 = scalar_select %p37, 0, %s36
      %s39 = ssub.s32 %s19, %s38
      %p40 = scmp.eq.s32.totalorder %s39, 0
      %s42 = sadd.s32 %s41, 1
      %s43 = scalar_select %p40, %s41, %s42
      %p46 = pneg %p40
      %p47 = scmp.eq.s32.totalorder %s12, 3
      %p48 = por %p46, %p47
      %p49 = scmp.ne.s32.totalorder %s41, %s44
      %p50 = scmp.eq.s32.totalorder %s12, 0
      %p51 = por %p49, %p50
      %p52 = scmp.ne.s32.totalorder %s41, %s44
      %p53 = scmp.eq.s32.totalorder %s17, 3
      %p54 = por %p52, %p53
      %p55 = scmp.ne.s32.totalorder %s44, %s45
      %p56 = scmp.eq.s32.totalorder %s17, 0
      %p57 = por %p55, %p56
      %p58 = scmp.ne.s32.totalorder %s44, %s45
      %p59 = scmp.eq.s32.totalorder %s18, 3
      %p60 = por %p58, %p59
      %p62 = scmp.ne.s32.totalorder %s45, %s61
      %p63 = scmp.eq.s32.totalorder %s18, 0
      %p64 = por %p62, %p63
      %s65 = ssub.s32 %s21, %s30
      %p66 = scmp.eq.s32.totalorder %s65, 0
      %s68 = sadd.s32 %s67, 1
      %s69 = scalar_select %p66, %s67, %s68
      %p72 = pneg %p66
      %p73 = scmp.eq.s32.totalorder %s12, 3
      %p74 = por %p72, %p73
      %p75 = scmp.ne.s32.totalorder %s67, %s70
      %p76 = scmp.eq.s32.totalorder %s12, 0
      %p77 = por %p75, %p76
      %p78 = scmp.ne.s32.totalorder %s67, %s70
      %p79 = scmp.eq.s32.totalorder %s17, 3
      %p80 = por %p78, %p79
      %p81 = scmp.ne.s32.totalorder %s70, %s71
      %p82 = scmp.eq.s32.totalorder %s17, 0
      %p83 = por %p81, %p82
      %p84 = scmp.ne.s32.totalorder %s70, %s71
      %p85 = scmp.eq.s32.totalorder %s18, 3
      %p86 = por %p84, %p85
      %p88 = scmp.ne.s32.totalorder %s71, %s87
      %p89 = scmp.eq.s32.totalorder %s18, 0
      %p90 = por %p88, %p89
      %s91 = ssub.s32 %s21, %s30
      %p92 = scmp.eq.s32.totalorder %s91, 0
      %s94 = sadd.s32 %s93, 1
      %s95 = scalar_select %p92, %s93, %s94
      %p98 = pneg %p92
      %p99 = scmp.eq.s32.totalorder %s12, 3
      %p100 = por %p98, %p99
      %p101 = scmp.ne.s32.totalorder %s93, %s96
      %p102 = scmp.eq.s32.totalorder %s12, 0
      %p103 = por %p101, %p102
      %p104 = scmp.ne.s32.totalorder %s93, %s96
      %p105 = scmp.eq.s32.totalorder %s17, 3
      %p106 = por %p104, %p105
      %p107 = scmp.ne.s32.totalorder %s96, %s97
      %p108 = scmp.eq.s32.totalorder %s17, 0
      %p109 = por %p107, %p108
      %p110 = scmp.ne.s32.totalorder %s96, %s97
      %p111 = scmp.eq.s32.totalorder %s18, 3
      %p112 = por %p110, %p111
      %p114 = scmp.ne.s32.totalorder %s97, %s113
      %p115 = scmp.eq.s32.totalorder %s18, 0
      %p116 = por %p114, %p115
      %s117 = smul.u32 %s21, %s20
      %s118 = smul.u32 %s30, %s34
      %s119 = ssub.s32 %s19, %s38
      %s120 = ssub.s32 %s117, %s118
      %s121 = sor.u32 %s119, %s120
      %p122 = scmp.eq.s32.totalorder %s121, 0
      %s124 = sadd.s32 %s123, 1
      %s125 = scalar_select %p122, %s123, %s124
      %p128 = pneg %p122
      %p129 = scmp.eq.s32.totalorder %s12, 3
      %p130 = por %p128, %p129
      %p131 = scmp.ne.s32.totalorder %s123, %s126
      %p132 = scmp.eq.s32.totalorder %s12, 0
      %p133 = por %p131, %p132
      %p134 = scmp.ne.s32.totalorder %s123, %s126
      %p135 = scmp.eq.s32.totalorder %s17, 3
      %p136 = por %p134, %p135
      %p137 = scmp.ne.s32.totalorder %s126, %s127
      %p138 = scmp.eq.s32.totalorder %s17, 0
      %p139 = por %p137, %p138
      %p140 = scmp.ne.s32.totalorder %s126, %s127
      %p141 = scmp.eq.s32.totalorder %s18, 3
      %p142 = por %p140, %p141
      %p144 = scmp.ne.s32.totalorder %s127, %s143
      %p145 = scmp.eq.s32.totalorder %s18, 0
      %p146 = por %p144, %p145
      %p147 = scmp.le.s32.totalorder 1, %s12
      %p148 = scmp.lt.s32.totalorder %s12, 5
      %p149 = pnand %p147, %p148
      %p150 = pneg %p149
      // Predicated region
      $region9: #{gmlp_language_model.3} parent=5 // pred_check
        _
      $region10: #{gmlp_language_model.3} parent=5 // pred_check_branch
        %152 = sbr.rel (%p149) target = $region12
      $region11: #{gmlp_language_model.3} parent=5 // pred_region
        %s153 = ssub.s32 %s12, 1
        // Predicated region
        $region13: #{gmlp_language_model.3} parent=11 // pred_check
          %p154 = pneg %p83
        $region14: #{gmlp_language_model.3} parent=11 // pred_check_branch
          %156 = sbr.rel (%p154) target = $region16
        $region15: #{gmlp_language_model.3} parent=11 // pred_region
          %s157 = smul.u32 8, %s24
          %p158 = scmp.lt.s32.totalorder %s157, 7
          %s159 = scalar_select %p158, %s157, 7
          %s160 = smul.addr %s159, 4
          %s161 = scalar_lea.vmem %s1, %s160
          %s162 = smul.u32 8, %s24
        $region16: #{gmlp_language_model.3} parent=11 // pred_fallthru
          _
        // Predicated region
        $region17: #{gmlp_language_model.3} parent=11 // pred_check
          %p163 = pneg %p109
        $region18: #{gmlp_language_model.3} parent=11 // pred_check_branch
          %165 = sbr.rel (%p163) target = $region20
        $region19: #{gmlp_language_model.3} parent=11 // pred_region
          %s166 = smul.u32 8, %s24
          %p167 = scmp.lt.s32.totalorder %s166, 7
          %s168 = scalar_select %p167, %s166, 7
          %s169 = scalar_lea.vmem %s2, %s168
          %s170 = smul.u32 8, %s24
        $region20: #{gmlp_language_model.3} parent=11 // pred_fallthru
          _
      $region12: #{gmlp_language_model.3} parent=5 // pred_fallthru
        _
      %p171 = scmp.lt.s32.totalorder %s12, 4
      // Predicated region
      $region21: #{gmlp_language_model.3} parent=5 // pred_check
        %p172 = pneg %p171
      $region22: #{gmlp_language_model.3} parent=5 // pred_check_branch
        %174 = sbr.rel (%p172) target = $region24
      $region23: #{gmlp_language_model.3} parent=5 // pred_region
        // Predicated region
        $region25: #{gmlp_language_model.3} parent=23 // pred_check
          %p175 = pneg %p51
        $region26: #{gmlp_language_model.3} parent=23 // pred_check_branch
          %177 = sbr.rel (%p175) target = $region28
        $region27: #{gmlp_language_model.3} parent=23 // pred_region
          %s178 = smul.u32 2, %s19
          %p179 = scmp.lt.s32.totalorder %s178, 3
          %s180 = scalar_select %p179, %s178, 3
          %s181 = smul.addr %s180, 2
          %s182 = smul.addr %s181, 8
          %s183 = scalar_lea.vmem %s0, %s182
          %s184 = smul.u32 2, %s19
        $region28: #{gmlp_language_model.3} parent=23 // pred_fallthru
          _
      $region24: #{gmlp_language_model.3} parent=5 // pred_fallthru
        _
      %p185 = scmp.le.s32.totalorder 1, %s12
      %p186 = scmp.lt.s32.totalorder %s12, 5
      %p187 = pnand %p185, %p186
      %p188 = pneg %p187
      // Predicated region
      $region29: #{gmlp_language_model.3} parent=5 // pred_check
        _
      $region30: #{gmlp_language_model.3} parent=5 // pred_check_branch
        %190 = sbr.rel (%p187) target = $region32
      $region31: #{gmlp_language_model.3} parent=5 // pred_region
        %s191 = ssub.s32 %s12, 1
        %s192 = smul.u32 2, %s22
        %p193 = scmp.lt.s32.totalorder %s192, 3
        %s194 = scalar_select %p193, %s192, 3
        %s195 = smul.addr %s194, 2
        %s196 = smul.addr %s195, 8
        %s197 = scalar_lea.vmem %s0, %s196
        %p198 = pneg %p57
        %p199 = pneg %p54
        %s200 = smul.u32 8, %s24
        %p201 = scmp.lt.s32.totalorder %s200, 7
        %s202 = scalar_select %p201, %s200, 7
        %s203 = smul.addr %s202, 4
        %s204 = scalar_lea.vmem %s1, %s203
        %p205 = pneg %p83
        %p206 = pneg %p80
        %s207 = smul.u32 8, %s24
        %p208 = scmp.lt.s32.totalorder %s207, 7
        %s209 = scalar_select %p208, %s207, 7
        %s210 = scalar_lea.vmem %s2, %s209
        %p211 = pneg %p109
        %p212 = pneg %p106
        %p213 = pneg %p139
        %p214 = pneg %p136
        %s215 = sand.u32 %s126, 1
        %s216 = scalar_lea.sflag [#allocation5], %s215
        %s217 = sand.u32 %s126, 1
        %s218 = smul.addr %s217, 256
        %s219 = scalar_lea.vmem [#allocation4], %s218
        %s220 = smul.u32 2, %s22
        %p221 = scmp.lt.s32.totalorder %s220, 3
        %s222 = scalar_select %p221, %s220, 3
        %s223 = smul.addr %s222, 2
        %s224 = smul.addr %s223, 8
        %s225 = scalar_lea.vmem %s0, %s224
        %s226 = smul.u32 2, %s22
        %s227 = smul.u32 8, %s24
        %p228 = scmp.lt.s32.totalorder %s227, 7
        %s229 = scalar_select %p228, %s227, 7
        %s230 = smul.addr %s229, 4
        %s231 = scalar_lea.vmem %s1, %s230
        %s232 = smul.u32 8, %s24
        %s233 = smul.u32 8, %s24
        %p234 = scmp.lt.s32.totalorder %s233, 7
        %s235 = scalar_select %p234, %s233, 7
        %s236 = scalar_lea.vmem %s2, %s235
        %s237 = smul.u32 8, %s24
        %s238 = smul.u32 %s24, %s23
        %s239 = smul.u32 2, %s22
        %s240 = smul.u32 8, %s238
        %p241 = scmp.eq.s32.totalorder %s23, 0
        %p242 = scmp.eq.s32.totalorder %s24, 0
        %p243 = pnand %p241, %p242
        %p244 = pneg %p243
        // Predicated region
        $region33: #{gmlp_language_model.3} parent=31 // pred_check
          _
        $region34: #{gmlp_language_model.3} parent=31 // pred_check_branch
          %246 = sbr.rel (%p243) target = $region36
        $region35: #{gmlp_language_model.3} parent=31 // pred_region
          %vm247 = vcmask 7168
          %248 = vst.msk [vmem:[#allocation2] sm:$0xff] %vm247, -inf
          %249 = vst.msk [vmem:[#allocation2 + $0x8] sm:$0xff] %vm247, -inf
          %250 = vst.msk [vmem:[#allocation2 + $0x10] sm:$0xff] %vm247, -inf
          %251 = vst.msk [vmem:[#allocation2 + $0x18] sm:$0xff] %vm247, -inf
          %252 = vst.msk [vmem:[#allocation3] sm:$0xff] %vm247, 0.0
          %253 = vst.msk [vmem:[#allocation3 + $0x8] sm:$0xff] %vm247, 0.0
          %254 = vst.msk [vmem:[#allocation3 + $0x10] sm:$0xff] %vm247, 0.0
          %255 = vst.msk [vmem:[#allocation3 + $0x18] sm:$0xff] %vm247, 0.0
        $region36: #{gmlp_language_model.3} parent=31 // pred_fallthru
          _
        %v256 = vld [vmem:[%s225] sm:$0xff]
        %v257 = vld [vmem:[%s225 + $0x8] sm:$0xff]
        %v258 = vld [vmem:[%s225 + $0x10] sm:$0xff]
        %v259 = vld [vmem:[%s225 + $0x18] sm:$0xff]
        %v260 = vpack.c.bf16 %v257, %v256
        %v261 = vpack.c.bf16 %v259, %v258
        %v262 = vld [vmem:[%s231] sm:$0xff]
        %v263 = vld [vmem:[%s231 + $0x8] sm:$0xff]
        %v264 = vld [vmem:[%s231 + $0x10] sm:$0xff]
        %v265 = vld [vmem:[%s231 + $0x18] sm:$0xff]
        %v266 = vld [vmem:[%s231 + $0x20] sm:$0xff]
        %v267 = vld [vmem:[%s231 + $0x28] sm:$0xff]
        %v268 = vld [vmem:[%s231 + $0x30] sm:$0xff]
        %v269 = vld [vmem:[%s231 + $0x38] sm:$0xff]
        %v270 = vld [vmem:[%s231 + $0x40] sm:$0xff]
        %v271 = vld [vmem:[%s231 + $0x48] sm:$0xff]
        %v272 = vld [vmem:[%s231 + $0x50] sm:$0xff]
        %v273 = vld [vmem:[%s231 + $0x58] sm:$0xff]
        %v274 = vld [vmem:[%s231 + $0x60] sm:$0xff]
        %v275 = vld [vmem:[%s231 + $0x68] sm:$0xff]
        %v276 = vld [vmem:[%s231 + $0x70] sm:$0xff]
        %v277 = vld [vmem:[%s231 + $0x78] sm:$0xff]
        %v278 = vld [vmem:[%s231 + $0x80] sm:$0xff]
        %v279 = vld [vmem:[%s231 + $0x88] sm:$0xff]
        %v280 = vld [vmem:[%s231 + $0x90] sm:$0xff]
        %v281 = vld [vmem:[%s231 + $0x98] sm:$0xff]
        %v282 = vld [vmem:[%s231 + $0xa0] sm:$0xff]
        %v283 = vld [vmem:[%s231 + $0xa8] sm:$0xff]
        %v284 = vld [vmem:[%s231 + $0xb0] sm:$0xff]
        %v285 = vld [vmem:[%s231 + $0xb8] sm:$0xff]
        %v286 = vld [vmem:[%s231 + $0xc0] sm:$0xff]
        %v287 = vld [vmem:[%s231 + $0xc8] sm:$0xff]
        %v288 = vld [vmem:[%s231 + $0xd0] sm:$0xff]
        %v289 = vld [vmem:[%s231 + $0xd8] sm:$0xff]
        %v290 = vld [vmem:[%s231 + $0xe0] sm:$0xff]
        %v291 = vld [vmem:[%s231 + $0xe8] sm:$0xff]
        %v292 = vld [vmem:[%s231 + $0xf0] sm:$0xff]
        %v293 = vld [vmem:[%s231 + $0xf8] sm:$0xff]
        %v294 = vld [vmem:[%s231 + $0x100] sm:$0xff]
        %v295 = vld [vmem:[%s231 + $0x108] sm:$0xff]
        %v296 = vld [vmem:[%s231 + $0x110] sm:$0xff]
        %v297 = vld [vmem:[%s231 + $0x118] sm:$0xff]
        %v298 = vld [vmem:[%s231 + $0x120] sm:$0xff]
        %v299 = vld [vmem:[%s231 + $0x128] sm:$0xff]
        %v300 = vld [vmem:[%s231 + $0x130] sm:$0xff]
        %v301 = vld [vmem:[%s231 + $0x138] sm:$0xff]
        %v302 = vld [vmem:[%s231 + $0x140] sm:$0xff]
        %v303 = vld [vmem:[%s231 + $0x148] sm:$0xff]
        %v304 = vld [vmem:[%s231 + $0x150] sm:$0xff]
        %v305 = vld [vmem:[%s231 + $0x158] sm:$0xff]
        %v306 = vld [vmem:[%s231 + $0x160] sm:$0xff]
        %v307 = vld [vmem:[%s231 + $0x168] sm:$0xff]
        %v308 = vld [vmem:[%s231 + $0x170] sm:$0xff]
        %v309 = vld [vmem:[%s231 + $0x178] sm:$0xff]
        %v310 = vld [vmem:[%s231 + $0x180] sm:$0xff]
        %v311 = vld [vmem:[%s231 + $0x188] sm:$0xff]
        %v312 = vld [vmem:[%s231 + $0x190] sm:$0xff]
        %v313 = vld [vmem:[%s231 + $0x198] sm:$0xff]
        %v314 = vld [vmem:[%s231 + $0x1a0] sm:$0xff]
        %v315 = vld [vmem:[%s231 + $0x1a8] sm:$0xff]
        %v316 = vld [vmem:[%s231 + $0x1b0] sm:$0xff]
        %v317 = vld [vmem:[%s231 + $0x1b8] sm:$0xff]
        %v318 = vld [vmem:[%s231 + $0x1c0] sm:$0xff]
        %v319 = vld [vmem:[%s231 + $0x1c8] sm:$0xff]
        %v320 = vld [vmem:[%s231 + $0x1d0] sm:$0xff]
        %v321 = vld [vmem:[%s231 + $0x1d8] sm:$0xff]
        %v322 = vld [vmem:[%s231 + $0x1e0] sm:$0xff]
        %v323 = vld [vmem:[%s231 + $0x1e8] sm:$0xff]
        %v324 = vld [vmem:[%s231 + $0x1f0] sm:$0xff]
        %v325 = vld [vmem:[%s231 + $0x1f8] sm:$0xff]
        %v326 = vld [vmem:[%s236] sm:$0xff]
        %v328 = vperm.slane %v326, 0
        %v329 = vperm.slane %v326, 1
        %v330 = vperm.slane %v326, 2
        %v331 = vperm.slane %v326, 3
        %v332 = vperm.slane %v326, 4
        %v333 = vperm.slane %v326, 5
        %v334 = vperm.slane %v326, 6
        %v335 = vperm.slane %v326, 7
        %v408 = vunpack.c.l.b16 %v262
        %v409 = vunpack.c.h.b16 %v262
        %v410 = vunpack.c.l.b16 %v263
        %v411 = vunpack.c.h.b16 %v263
        %v412 = vunpack.c.l.b16 %v264
        %v413 = vunpack.c.h.b16 %v264
        %v414 = vunpack.c.l.b16 %v265
        %v415 = vunpack.c.h.b16 %v265
        %v416 = vunpack.c.l.b16 %v266
        %v417 = vunpack.c.h.b16 %v266
        %v418 = vunpack.c.l.b16 %v267
        %v419 = vunpack.c.h.b16 %v267
        %v420 = vunpack.c.l.b16 %v268
        %v421 = vunpack.c.h.b16 %v268
        %v422 = vunpack.c.l.b16 %v269
        %v423 = vunpack.c.h.b16 %v269
        %v424 = vunpack.c.l.b16 %v270
        %v425 = vunpack.c.h.b16 %v270
        %v426 = vunpack.c.l.b16 %v271
        %v427 = vunpack.c.h.b16 %v271
        %v428 = vunpack.c.l.b16 %v272
        %v429 = vunpack.c.h.b16 %v272
        %v430 = vunpack.c.l.b16 %v273
        %v431 = vunpack.c.h.b16 %v273
        %v432 = vunpack.c.l.b16 %v274
        %v433 = vunpack.c.h.b16 %v274
        %v434 = vunpack.c.l.b16 %v275
        %v435 = vunpack.c.h.b16 %v275
        %v436 = vunpack.c.l.b16 %v276
        %v437 = vunpack.c.h.b16 %v276
        %v438 = vunpack.c.l.b16 %v277
        %v439 = vunpack.c.h.b16 %v277
        %v440 = vunpack.c.l.b16 %v278
        %v441 = vunpack.c.h.b16 %v278
        %v442 = vunpack.c.l.b16 %v279
        %v443 = vunpack.c.h.b16 %v279
        %v444 = vunpack.c.l.b16 %v280
        %v445 = vunpack.c.h.b16 %v280
        %v446 = vunpack.c.l.b16 %v281
        %v447 = vunpack.c.h.b16 %v281
        %v448 = vunpack.c.l.b16 %v282
        %v449 = vunpack.c.h.b16 %v282
        %v450 = vunpack.c.l.b16 %v283
        %v451 = vunpack.c.h.b16 %v283
        %v452 = vunpack.c.l.b16 %v284
        %v453 = vunpack.c.h.b16 %v284
        %v454 = vunpack.c.l.b16 %v285
        %v455 = vunpack.c.h.b16 %v285
        %v456 = vunpack.c.l.b16 %v286
        %v457 = vunpack.c.h.b16 %v286
        %v458 = vunpack.c.l.b16 %v287
        %v459 = vunpack.c.h.b16 %v287
        %v460 = vunpack.c.l.b16 %v288
        %v461 = vunpack.c.h.b16 %v288
        %v462 = vunpack.c.l.b16 %v289
        %v463 = vunpack.c.h.b16 %v289
        %v464 = vunpack.c.l.b16 %v290
        %v465 = vunpack.c.h.b16 %v290
        %v466 = vunpack.c.l.b16 %v291
        %v467 = vunpack.c.h.b16 %v291
        %v468 = vunpack.c.l.b16 %v292
        %v469 = vunpack.c.h.b16 %v292
        %v470 = vunpack.c.l.b16 %v293
        %v471 = vunpack.c.h.b16 %v293
        %v472 = vunpack.c.l.b16 %v294
        %v473 = vunpack.c.h.b16 %v294
        %v474 = vunpack.c.l.b16 %v295
        %v475 = vunpack.c.h.b16 %v295
        %v476 = vunpack.c.l.b16 %v296
        %v477 = vunpack.c.h.b16 %v296
        %v478 = vunpack.c.l.b16 %v297
        %v479 = vunpack.c.h.b16 %v297
        %v480 = vunpack.c.l.b16 %v298
        %v481 = vunpack.c.h.b16 %v298
        %v482 = vunpack.c.l.b16 %v299
        %v483 = vunpack.c.h.b16 %v299
        %v484 = vunpack.c.l.b16 %v300
        %v485 = vunpack.c.h.b16 %v300
        %v486 = vunpack.c.l.b16 %v301
        %v487 = vunpack.c.h.b16 %v301
        %v488 = vunpack.c.l.b16 %v302
        %v489 = vunpack.c.h.b16 %v302
        %v490 = vunpack.c.l.b16 %v303
        %v491 = vunpack.c.h.b16 %v303
        %v492 = vunpack.c.l.b16 %v304
        %v493 = vunpack.c.h.b16 %v304
        %v494 = vunpack.c.l.b16 %v305
        %v495 = vunpack.c.h.b16 %v305
        %v496 = vunpack.c.l.b16 %v306
        %v497 = vunpack.c.h.b16 %v306
        %v498 = vunpack.c.l.b16 %v307
        %v499 = vunpack.c.h.b16 %v307
        %v500 = vunpack.c.l.b16 %v308
        %v501 = vunpack.c.h.b16 %v308
        %v502 = vunpack.c.l.b16 %v309
        %v503 = vunpack.c.h.b16 %v309
        %v504 = vunpack.c.l.b16 %v310
        %v505 = vunpack.c.h.b16 %v310
        %v506 = vunpack.c.l.b16 %v311
        %v507 = vunpack.c.h.b16 %v311
        %v508 = vunpack.c.l.b16 %v312
        %v509 = vunpack.c.h.b16 %v312
        %v510 = vunpack.c.l.b16 %v313
        %v511 = vunpack.c.h.b16 %v313
        %v512 = vunpack.c.l.b16 %v314
        %v513 = vunpack.c.h.b16 %v314
        %v514 = vunpack.c.l.b16 %v315
        %v515 = vunpack.c.h.b16 %v315
        %v516 = vunpack.c.l.b16 %v316
        %v517 = vunpack.c.h.b16 %v316
        %v518 = vunpack.c.l.b16 %v317
        %v519 = vunpack.c.h.b16 %v317
        %v520 = vunpack.c.l.b16 %v318
        %v521 = vunpack.c.h.b16 %v318
        %v522 = vunpack.c.l.b16 %v319
        %v523 = vunpack.c.h.b16 %v319
        %v524 = vunpack.c.l.b16 %v320
        %v525 = vunpack.c.h.b16 %v320
        %v526 = vunpack.c.l.b16 %v321
        %v527 = vunpack.c.h.b16 %v321
        %v528 = vunpack.c.l.b16 %v322
        %v529 = vunpack.c.h.b16 %v322
        %v530 = vunpack.c.l.b16 %v323
        %v531 = vunpack.c.h.b16 %v323
        %v532 = vunpack.c.l.b16 %v324
        %v533 = vunpack.c.h.b16 %v324
        %v534 = vunpack.c.l.b16 %v325
        %v535 = vunpack.c.h.b16 %v325
        %v536 = vpack.c.b16 %v416, %v408
        %v537 = vpack.c.b16 %v417, %v409
        %v538 = vpack.c.b16 %v418, %v410
        %v539 = vpack.c.b16 %v419, %v411
        %v540 = vpack.c.b16 %v420, %v412
        %v541 = vpack.c.b16 %v421, %v413
        %v542 = vpack.c.b16 %v422, %v414
        %v543 = vpack.c.b16 %v423, %v415
        %v544 = vpack.c.b16 %v432, %v424
        %v545 = vpack.c.b16 %v433, %v425
        %v546 = vpack.c.b16 %v434, %v426
        %v547 = vpack.c.b16 %v435, %v427
        %v548 = vpack.c.b16 %v436, %v428
        %v549 = vpack.c.b16 %v437, %v429
        %v550 = vpack.c.b16 %v438, %v430
        %v551 = vpack.c.b16 %v439, %v431
        %v552 = vpack.c.b16 %v448, %v440
        %v553 = vpack.c.b16 %v449, %v441
        %v554 = vpack.c.b16 %v450, %v442
        %v555 = vpack.c.b16 %v451, %v443
        %v556 = vpack.c.b16 %v452, %v444
        %v557 = vpack.c.b16 %v453, %v445
        %v558 = vpack.c.b16 %v454, %v446
        %v559 = vpack.c.b16 %v455, %v447
        %v560 = vpack.c.b16 %v464, %v456
        %v561 = vpack.c.b16 %v465, %v457
        %v562 = vpack.c.b16 %v466, %v458
        %v563 = vpack.c.b16 %v467, %v459
        %v564 = vpack.c.b16 %v468, %v460
        %v565 = vpack.c.b16 %v469, %v461
        %v566 = vpack.c.b16 %v470, %v462
        %v567 = vpack.c.b16 %v471, %v463
        %v568 = vpack.c.b16 %v480, %v472
        %v569 = vpack.c.b16 %v481, %v473
        %v570 = vpack.c.b16 %v482, %v474
        %v571 = vpack.c.b16 %v483, %v475
        %v572 = vpack.c.b16 %v484, %v476
        %v573 = vpack.c.b16 %v485, %v477
        %v574 = vpack.c.b16 %v486, %v478
        %v575 = vpack.c.b16 %v487, %v479
        %v576 = vpack.c.b16 %v496, %v488
        %v577 = vpack.c.b16 %v497, %v489
        %v578 = vpack.c.b16 %v498, %v490
        %v579 = vpack.c.b16 %v499, %v491
        %v580 = vpack.c.b16 %v500, %v492
        %v581 = vpack.c.b16 %v501, %v493
        %v582 = vpack.c.b16 %v502, %v494
        %v583 = vpack.c.b16 %v503, %v495
        %v584 = vpack.c.b16 %v512, %v504
        %v585 = vpack.c.b16 %v513, %v505
        %v586 = vpack.c.b16 %v514, %v506
        %v587 = vpack.c.b16 %v515, %v507
        %v588 = vpack.c.b16 %v516, %v508
        %v589 = vpack.c.b16 %v517, %v509
        %v590 = vpack.c.b16 %v518, %v510
        %v591 = vpack.c.b16 %v519, %v511
        %v592 = vpack.c.b16 %v528, %v520
        %v593 = vpack.c.b16 %v529, %v521
        %v594 = vpack.c.b16 %v530, %v522
        %v595 = vpack.c.b16 %v531, %v523
        %v596 = vpack.c.b16 %v532, %v524
        %v597 = vpack.c.b16 %v533, %v525
        %v598 = vpack.c.b16 %v534, %v526
        %v599 = vpack.c.b16 %v535, %v527
        %664 = vmatpush.bf16.msra.mxu0 %v592
        %665 = vmatpush.bf16.msra.mxu0 %v584
        %666 = vmatpush.bf16.msra.mxu0 %v576
        %667 = vmatpush.bf16.msra.mxu0 %v568
        %668 = vmatpush.bf16.msra.mxu0 %v560
        %669 = vmatpush.bf16.msra.mxu0 %v552
        %670 = vmatpush.bf16.msra.mxu0 %v544
        %671 = vmatpush.bf16.msra.mxu0 %v536
        %672 = vmatmul.bf16.gmra.mxu0 %v260
        %v673 = vpop.f32.mrf.mxu0
        %v674 = vadd.f32 %v328, %v673
        %v675 = vpop.f32.mrf.mxu0
        %v676 = vadd.f32 %v328, %v675
        %677 = vmatmul.bf16.gmra.mxu0 %v261
        %v678 = vpop.f32.mrf.mxu0
        %v679 = vadd.f32 %v328, %v678
        %v680 = vpop.f32.mrf.mxu0
        %v681 = vadd.f32 %v328, %v680
        %682 = vdwg.mxu0
        %683 = vmatpush.bf16.msra.mxu0 %v593
        %684 = vmatpush.bf16.msra.mxu0 %v585
        %685 = vmatpush.bf16.msra.mxu0 %v577
        %686 = vmatpush.bf16.msra.mxu0 %v569
        %687 = vmatpush.bf16.msra.mxu0 %v561
        %688 = vmatpush.bf16.msra.mxu0 %v553
        %689 = vmatpush.bf16.msra.mxu0 %v545
        %690 = vmatpush.bf16.msra.mxu0 %v537
        %691 = vmatmul.bf16.gmra.mxu0 %v260
        %v692 = vpop.f32.mrf.mxu0
        %v693 = vadd.f32 %v329, %v692
        %v694 = vpop.f32.mrf.mxu0
        %v695 = vadd.f32 %v329, %v694
        %696 = vmatmul.bf16.gmra.mxu0 %v261
        %v697 = vpop.f32.mrf.mxu0
        %v698 = vadd.f32 %v329, %v697
        %v699 = vpop.f32.mrf.mxu0
        %v700 = vadd.f32 %v329, %v699
        %701 = vdwg.mxu0
        %702 = vmatpush.bf16.msra.mxu0 %v594
        %703 = vmatpush.bf16.msra.mxu0 %v586
        %704 = vmatpush.bf16.msra.mxu0 %v578
        %705 = vmatpush.bf16.msra.mxu0 %v570
        %706 = vmatpush.bf16.msra.mxu0 %v562
        %707 = vmatpush.bf16.msra.mxu0 %v554
        %708 = vmatpush.bf16.msra.mxu0 %v546
        %709 = vmatpush.bf16.msra.mxu0 %v538
        %710 = vmatmul.bf16.gmra.mxu0 %v260
        %v711 = vpop.f32.mrf.mxu0
        %v712 = vadd.f32 %v330, %v711
        %v713 = vpop.f32.mrf.mxu0
        %v714 = vadd.f32 %v330, %v713
        %715 = vmatmul.bf16.gmra.mxu0 %v261
        %v716 = vpop.f32.mrf.mxu0
        %v717 = vadd.f32 %v330, %v716
        %v718 = vpop.f32.mrf.mxu0
        %v719 = vadd.f32 %v330, %v718
        %720 = vdwg.mxu0
        %721 = vmatpush.bf16.msra.mxu0 %v595
        %722 = vmatpush.bf16.msra.mxu0 %v587
        %723 = vmatpush.bf16.msra.mxu0 %v579
        %724 = vmatpush.bf16.msra.mxu0 %v571
        %725 = vmatpush.bf16.msra.mxu0 %v563
        %726 = vmatpush.bf16.msra.mxu0 %v555
        %727 = vmatpush.bf16.msra.mxu0 %v547
        %728 = vmatpush.bf16.msra.mxu0 %v539
        %729 = vmatmul.bf16.gmra.mxu0 %v260
        %v730 = vpop.f32.mrf.mxu0
        %v731 = vadd.f32 %v331, %v730
        %v732 = vpop.f32.mrf.mxu0
        %v733 = vadd.f32 %v331, %v732
        %734 = vmatmul.bf16.gmra.mxu0 %v261
        %v735 = vpop.f32.mrf.mxu0
        %v736 = vadd.f32 %v331, %v735
        %v737 = vpop.f32.mrf.mxu0
        %v738 = vadd.f32 %v331, %v737
        %739 = vdwg.mxu0
        %740 = vmatpush.bf16.msra.mxu0 %v596
        %741 = vmatpush.bf16.msra.mxu0 %v588
        %742 = vmatpush.bf16.msra.mxu0 %v580
        %743 = vmatpush.bf16.msra.mxu0 %v572
        %744 = vmatpush.bf16.msra.mxu0 %v564
        %745 = vmatpush.bf16.msra.mxu0 %v556
        %746 = vmatpush.bf16.msra.mxu0 %v548
        %747 = vmatpush.bf16.msra.mxu0 %v540
        %748 = vmatmul.bf16.gmra.mxu0 %v260
        %v749 = vpop.f32.mrf.mxu0
        %v750 = vadd.f32 %v332, %v749
        %v751 = vpop.f32.mrf.mxu0
        %v752 = vadd.f32 %v332, %v751
        %753 = vmatmul.bf16.gmra.mxu0 %v261
        %v754 = vpop.f32.mrf.mxu0
        %v755 = vadd.f32 %v332, %v754
        %v756 = vpop.f32.mrf.mxu0
        %v757 = vadd.f32 %v332, %v756
        %758 = vdwg.mxu0
        %759 = vmatpush.bf16.msra.mxu0 %v597
        %760 = vmatpush.bf16.msra.mxu0 %v589
        %761 = vmatpush.bf16.msra.mxu0 %v581
        %762 = vmatpush.bf16.msra.mxu0 %v573
        %763 = vmatpush.bf16.msra.mxu0 %v565
        %764 = vmatpush.bf16.msra.mxu0 %v557
        %765 = vmatpush.bf16.msra.mxu0 %v549
        %766 = vmatpush.bf16.msra.mxu0 %v541
        %767 = vmatmul.bf16.gmra.mxu0 %v260
        %v768 = vpop.f32.mrf.mxu0
        %v769 = vadd.f32 %v333, %v768
        %v770 = vpop.f32.mrf.mxu0
        %v771 = vadd.f32 %v333, %v770
        %772 = vmatmul.bf16.gmra.mxu0 %v261
        %v773 = vpop.f32.mrf.mxu0
        %v774 = vadd.f32 %v333, %v773
        %v775 = vpop.f32.mrf.mxu0
        %v776 = vadd.f32 %v333, %v775
        %777 = vdwg.mxu0
        %778 = vmatpush.bf16.msra.mxu0 %v598
        %779 = vmatpush.bf16.msra.mxu0 %v590
        %780 = vmatpush.bf16.msra.mxu0 %v582
        %781 = vmatpush.bf16.msra.mxu0 %v574
        %782 = vmatpush.bf16.msra.mxu0 %v566
        %783 = vmatpush.bf16.msra.mxu0 %v558
        %784 = vmatpush.bf16.msra.mxu0 %v550
        %785 = vmatpush.bf16.msra.mxu0 %v542
        %786 = vmatmul.bf16.gmra.mxu0 %v260
        %v787 = vpop.f32.mrf.mxu0
        %v788 = vadd.f32 %v334, %v787
        %v789 = vpop.f32.mrf.mxu0
        %v790 = vadd.f32 %v334, %v789
        %791 = vmatmul.bf16.gmra.mxu0 %v261
        %v792 = vpop.f32.mrf.mxu0
        %v793 = vadd.f32 %v334, %v792
        %v794 = vpop.f32.mrf.mxu0
        %v795 = vadd.f32 %v334, %v794
        %796 = vdwg.mxu0
        %797 = vmatpush.bf16.msra.mxu0 %v599
        %798 = vmatpush.bf16.msra.mxu0 %v591
        %799 = vmatpush.bf16.msra.mxu0 %v583
        %800 = vmatpush.bf16.msra.mxu0 %v575
        %801 = vmatpush.bf16.msra.mxu0 %v567
        %802 = vmatpush.bf16.msra.mxu0 %v559
        %803 = vmatpush.bf16.msra.mxu0 %v551
        %804 = vmatpush.bf16.msra.mxu0 %v543
        %805 = vmatmul.bf16.gmra.mxu0 %v260
        %v806 = vpop.f32.mrf.mxu0
        %v807 = vadd.f32 %v335, %v806
        %v808 = vpop.f32.mrf.mxu0
        %v809 = vadd.f32 %v335, %v808
        %810 = vmatmul.bf16.gmra.mxu0 %v261
        %v811 = vpop.f32.mrf.mxu0
        %v812 = vadd.f32 %v335, %v811
        %v813 = vpop.f32.mrf.mxu0
        %v814 = vadd.f32 %v335, %v813
        %815 = vdwg.mxu0
        // Predicated region
        $region37: #{gmlp_language_model.3} parent=31 // pred_check
          %p816 = pneg %p241
        $region38: #{gmlp_language_model.3} parent=31 // pred_check_branch
          %818 = sbr.rel (%p816) target = $region40
        $region39: #{gmlp_language_model.3} parent=31 // pred_region
          %v819 = vld [vmem:[#allocation2] sm:$0xff]
          %v820 = vld [vmem:[#allocation2 + $0x8] sm:$0xff]
          %v821 = vld [vmem:[#allocation2 + $0x10] sm:$0xff]
          %v822 = vld [vmem:[#allocation2 + $0x18] sm:$0xff]
          %v823 = vmax.f32 %v674, %v693
          %v824 = vmax.f32 %v823, %v712
          %v825 = vmax.f32 %v824, %v731
          %v826 = vmax.f32 %v825, %v750
          %v827 = vmax.f32 %v826, %v769
          %v828 = vmax.f32 %v827, %v788
          %v829 = vmax.f32 %v828, %v807
          %830 = vmax.xlane.f32.xlu0 %v829
          %v831 = vpop.xlane.xlu0 %830
          %v832 = vmax.f32 %v676, %v695
          %v833 = vmax.f32 %v832, %v714
          %v834 = vmax.f32 %v833, %v733
          %v835 = vmax.f32 %v834, %v752
          %v836 = vmax.f32 %v835, %v771
          %v837 = vmax.f32 %v836, %v790
          %v838 = vmax.f32 %v837, %v809
          %839 = vmax.xlane.f32.xlu0 %v838
          %v840 = vpop.xlane.xlu0 %839
          %v841 = vmax.f32 %v679, %v698
          %v842 = vmax.f32 %v841, %v717
          %v843 = vmax.f32 %v842, %v736
          %v844 = vmax.f32 %v843, %v755
          %v845 = vmax.f32 %v844, %v774
          %v846 = vmax.f32 %v845, %v793
          %v847 = vmax.f32 %v846, %v812
          %848 = vmax.xlane.f32.xlu0 %v847
          %v849 = vpop.xlane.xlu0 %848
          %v850 = vmax.f32 %v681, %v700
          %v851 = vmax.f32 %v850, %v719
          %v852 = vmax.f32 %v851, %v738
          %v853 = vmax.f32 %v852, %v757
          %v854 = vmax.f32 %v853, %v776
          %v855 = vmax.f32 %v854, %v795
          %v856 = vmax.f32 %v855, %v814
          %857 = vmax.xlane.f32.xlu0 %v856
          %v858 = vpop.xlane.xlu0 %857
          %v859 = vmax.f32 %v819, %v831
          %v860 = vmax.f32 %v820, %v840
          %v861 = vmax.f32 %v821, %v849
          %v862 = vmax.f32 %v822, %v858
          %v863 = vld [vmem:[#allocation3] sm:$0xff]
          %v864 = vld [vmem:[#allocation3 + $0x8] sm:$0xff]
          %v865 = vld [vmem:[#allocation3 + $0x10] sm:$0xff]
          %v866 = vld [vmem:[#allocation3 + $0x18] sm:$0xff]
          %v867 = vsub.f32 %v819, %v859
          %v868 = vsub.f32 %v820, %v860
          %v869 = vsub.f32 %v821, %v861
          %v870 = vsub.f32 %v822, %v862
          %v871 = vmul.f32 %v867, 1.442695
          %v872 = vpow.pop %v871
          %v873 = vmul.f32 %v868, 1.442695
          %v874 = vpow.pop %v873
          %v875 = vmul.f32 %v869, 1.442695
          %v876 = vpow.pop %v875
          %v877 = vmul.f32 %v870, 1.442695
          %v878 = vpow.pop %v877
          %v879 = vmul.f32 %v863, %v872
          %v880 = vmul.f32 %v864, %v874
          %v881 = vmul.f32 %v865, %v876
          %v882 = vmul.f32 %v866, %v878
          %884 = vset.pattern.permute.xlu0 0
          %885 = vperm.xlu0 %884, %v859
          %v886 = vpop.permute.xlu0 %885
          %889 = vset.pattern.permute.xlu0 0
          %890 = vperm.xlu0 %889, %v860
          %v891 = vpop.permute.xlu0 %890
          %894 = vset.pattern.permute.xlu0 0
          %895 = vperm.xlu0 %894, %v861
          %v896 = vpop.permute.xlu0 %895
          %899 = vset.pattern.permute.xlu0 0
          %900 = vperm.xlu0 %899, %v862
          %v901 = vpop.permute.xlu0 %900
          %v903 = vsub.f32 %v674, %v886
          %v904 = vsub.f32 %v693, %v886
          %v905 = vsub.f32 %v712, %v886
          %v906 = vsub.f32 %v731, %v886
          %v907 = vsub.f32 %v750, %v886
          %v908 = vsub.f32 %v769, %v886
          %v909 = vsub.f32 %v788, %v886
          %v910 = vsub.f32 %v807, %v886
          %v911 = vsub.f32 %v676, %v891
          %v912 = vsub.f32 %v695, %v891
          %v913 = vsub.f32 %v714, %v891
          %v914 = vsub.f32 %v733, %v891
          %v915 = vsub.f32 %v752, %v891
          %v916 = vsub.f32 %v771, %v891
          %v917 = vsub.f32 %v790, %v891
          %v918 = vsub.f32 %v809, %v891
          %v919 = vsub.f32 %v679, %v896
          %v920 = vsub.f32 %v698, %v896
          %v921 = vsub.f32 %v717, %v896
          %v922 = vsub.f32 %v736, %v896
          %v923 = vsub.f32 %v755, %v896
          %v924 = vsub.f32 %v774, %v896
          %v925 = vsub.f32 %v793, %v896
          %v926 = vsub.f32 %v812, %v896
          %v927 = vsub.f32 %v681, %v901
          %v928 = vsub.f32 %v700, %v901
          %v929 = vsub.f32 %v719, %v901
          %v930 = vsub.f32 %v738, %v901
          %v931 = vsub.f32 %v757, %v901
          %v932 = vsub.f32 %v776, %v901
          %v933 = vsub.f32 %v795, %v901
          %v934 = vsub.f32 %v814, %v901
          %v935 = vmul.f32 %v903, 1.442695
          %v936 = vpow.pop %v935
          %v937 = vmul.f32 %v904, 1.442695
          %v938 = vpow.pop %v937
          %v939 = vmul.f32 %v905, 1.442695
          %v940 = vpow.pop %v939
          %v941 = vmul.f32 %v906, 1.442695
          %v942 = vpow.pop %v941
          %v943 = vmul.f32 %v907, 1.442695
          %v944 = vpow.pop %v943
          %v945 = vmul.f32 %v908, 1.442695
          %v946 = vpow.pop %v945
          %v947 = vmul.f32 %v909, 1.442695
          %v948 = vpow.pop %v947
          %v949 = vmul.f32 %v910, 1.442695
          %v950 = vpow.pop %v949
          %v951 = vmul.f32 %v911, 1.442695
          %v952 = vpow.pop %v951
          %v953 = vmul.f32 %v912, 1.442695
          %v954 = vpow.pop %v953
          %v955 = vmul.f32 %v913, 1.442695
          %v956 = vpow.pop %v955
          %v957 = vmul.f32 %v914, 1.442695
          %v958 = vpow.pop %v957
          %v959 = vmul.f32 %v915, 1.442695
          %v960 = vpow.pop %v959
          %v961 = vmul.f32 %v916, 1.442695
          %v962 = vpow.pop %v961
          %v963 = vmul.f32 %v917, 1.442695
          %v964 = vpow.pop %v963
          %v965 = vmul.f32 %v918, 1.442695
          %v966 = vpow.pop %v965
          %v967 = vmul.f32 %v919, 1.442695
          %v968 = vpow.pop %v967
          %v969 = vmul.f32 %v920, 1.442695
          %v970 = vpow.pop %v969
          %v971 = vmul.f32 %v921, 1.442695
          %v972 = vpow.pop %v971
          %v973 = vmul.f32 %v922, 1.442695
          %v974 = vpow.pop %v973
          %v975 = vmul.f32 %v923, 1.442695
          %v976 = vpow.pop %v975
          %v977 = vmul.f32 %v924, 1.442695
          %v978 = vpow.pop %v977
          %v979 = vmul.f32 %v925, 1.442695
          %v980 = vpow.pop %v979
          %v981 = vmul.f32 %v926, 1.442695
          %v982 = vpow.pop %v981
          %v983 = vmul.f32 %v927, 1.442695
          %v984 = vpow.pop %v983
          %v985 = vmul.f32 %v928, 1.442695
          %v986 = vpow.pop %v985
          %v987 = vmul.f32 %v929, 1.442695
          %v988 = vpow.pop %v987
          %v989 = vmul.f32 %v930, 1.442695
          %v990 = vpow.pop %v989
          %v991 = vmul.f32 %v931, 1.442695
          %v992 = vpow.pop %v991
          %v993 = vmul.f32 %v932, 1.442695
          %v994 = vpow.pop %v993
          %v995 = vmul.f32 %v933, 1.442695
          %v996 = vpow.pop %v995
          %v997 = vmul.f32 %v934, 1.442695
          %v998 = vpow.pop %v997
          %v999 = vadd.f32 %v936, %v938
          %v1000 = vadd.f32 %v999, %v940
          %v1001 = vadd.f32 %v1000, %v942
          %v1002 = vadd.f32 %v1001, %v944
          %v1003 = vadd.f32 %v1002, %v946
          %v1004 = vadd.f32 %v1003, %v948
          %v1005 = vadd.f32 %v1004, %v950
          %1006 = vadd.xlane.f32.xlu0 %v1005
          %v1007 = vpop.xlane.xlu0 %1006
          %v1008 = vadd.f32 %v952, %v954
          %v1009 = vadd.f32 %v1008, %v956
          %v1010 = vadd.f32 %v1009, %v958
          %v1011 = vadd.f32 %v1010, %v960
          %v1012 = vadd.f32 %v1011, %v962
          %v1013 = vadd.f32 %v1012, %v964
          %v1014 = vadd.f32 %v1013, %v966
          %1015 = vadd.xlane.f32.xlu0 %v1014
          %v1016 = vpop.xlane.xlu0 %1015
          %v1017 = vadd.f32 %v968, %v970
          %v1018 = vadd.f32 %v1017, %v972
          %v1019 = vadd.f32 %v1018, %v974
          %v1020 = vadd.f32 %v1019, %v976
          %v1021 = vadd.f32 %v1020, %v978
          %v1022 = vadd.f32 %v1021, %v980
          %v1023 = vadd.f32 %v1022, %v982
          %1024 = vadd.xlane.f32.xlu0 %v1023
          %v1025 = vpop.xlane.xlu0 %1024
          %v1026 = vadd.f32 %v984, %v986
          %v1027 = vadd.f32 %v1026, %v988
          %v1028 = vadd.f32 %v1027, %v990
          %v1029 = vadd.f32 %v1028, %v992
          %v1030 = vadd.f32 %v1029, %v994
          %v1031 = vadd.f32 %v1030, %v996
          %v1032 = vadd.f32 %v1031, %v998
          %1033 = vadd.xlane.f32.xlu0 %v1032
          %v1034 = vpop.xlane.xlu0 %1033
          %v1035 = vadd.f32 %v879, %v1007
          %v1036 = vadd.f32 %v880, %v1016
          %v1037 = vadd.f32 %v881, %v1025
          %v1038 = vadd.f32 %v882, %v1034
          %vm1039 = vcmask 7168
          %1040 = vst.msk [vmem:[#allocation3] sm:$0xff] %vm1039, %v1035
          %1041 = vst.msk [vmem:[#allocation3 + $0x8] sm:$0xff] %vm1039, %v1036
          %1042 = vst.msk [vmem:[#allocation3 + $0x10] sm:$0xff] %vm1039, %v1037
          %1043 = vst.msk [vmem:[#allocation3 + $0x18] sm:$0xff] %vm1039, %v1038
          %1044 = vst.msk [vmem:[#allocation2] sm:$0xff] %vm1039, %v859
          %1045 = vst.msk [vmem:[#allocation2 + $0x8] sm:$0xff] %vm1039, %v860
          %1046 = vst.msk [vmem:[#allocation2 + $0x10] sm:$0xff] %vm1039, %v861
          %1047 = vst.msk [vmem:[#allocation2 + $0x18] sm:$0xff] %vm1039, %v862
        $region40: #{gmlp_language_model.3} parent=31 // pred_fallthru
          _
        // Predicated region
        $region41: #{gmlp_language_model.3} parent=31 // pred_check
          _
        $region42: #{gmlp_language_model.3} parent=31 // pred_check_branch
          %1049 = sbr.rel (%p243) target = $region44
        $region43: #{gmlp_language_model.3} parent=31 // pred_region
          %v1050 = vld [vmem:[#allocation2] sm:$0xff]
          %v1051 = vld [vmem:[#allocation2 + $0x8] sm:$0xff]
          %v1052 = vld [vmem:[#allocation2 + $0x10] sm:$0xff]
          %v1053 = vld [vmem:[#allocation2 + $0x18] sm:$0xff]
          %v1054 = vld [vmem:[#allocation3] sm:$0xff]
          %v1055 = vld [vmem:[#allocation3 + $0x8] sm:$0xff]
          %v1056 = vld [vmem:[#allocation3 + $0x10] sm:$0xff]
          %v1057 = vld [vmem:[#allocation3 + $0x18] sm:$0xff]
          %v1058 = vlog2.pop %v1054
          %v1059 = vmul.f32 %v1058, 0.6931472
          %v1060 = vlog2.pop %v1055
          %v1061 = vmul.f32 %v1060, 0.6931472
          %v1062 = vlog2.pop %v1056
          %v1063 = vmul.f32 %v1062, 0.6931472
          %v1064 = vlog2.pop %v1057
          %v1065 = vmul.f32 %v1064, 0.6931472
          %v1066 = vadd.f32 %v1050, %v1059
          %v1067 = vadd.f32 %v1051, %v1061
          %v1068 = vadd.f32 %v1052, %v1063
          %v1069 = vadd.f32 %v1053, %v1065
          %vm1070 = vcmask 7168
          %1071 = vst.msk [vmem:[#allocation2] sm:$0xff] %vm1070, %v1066
          %1072 = vst.msk [vmem:[#allocation2 + $0x8] sm:$0xff] %vm1070, %v1067
          %1073 = vst.msk [vmem:[#allocation2 + $0x10] sm:$0xff] %vm1070, %v1068
          %1074 = vst.msk [vmem:[#allocation2 + $0x18] sm:$0xff] %vm1070, %v1069
        $region44: #{gmlp_language_model.3} parent=31 // pred_fallthru
          _
        %p1075 = scmp.eq.s32.totalorder %s23, 1
        // Predicated region
        $region45: #{gmlp_language_model.3} parent=31 // pred_check
          %p1076 = pneg %p1075
        $region46: #{gmlp_language_model.3} parent=31 // pred_check_branch
          %1078 = sbr.rel (%p1076) target = $region48
        $region47: #{gmlp_language_model.3} parent=31 // pred_region
          %v1079 = vld [vmem:[#allocation2] sm:$0xff]
          %v1080 = vld [vmem:[#allocation2 + $0x8] sm:$0xff]
          %v1081 = vld [vmem:[#allocation2 + $0x10] sm:$0xff]
          %v1082 = vld [vmem:[#allocation2 + $0x18] sm:$0xff]
          %1084 = vset.pattern.permute.xlu0 0
          %1085 = vperm.xlu0 %1084, %v1079
          %v1086 = vpop.permute.xlu0 %1085
          %1089 = vset.pattern.permute.xlu0 0
          %1090 = vperm.xlu0 %1089, %v1080
          %v1091 = vpop.permute.xlu0 %1090
          %1094 = vset.pattern.permute.xlu0 0
          %1095 = vperm.xlu0 %1094, %v1081
          %v1096 = vpop.permute.xlu0 %1095
          %1099 = vset.pattern.permute.xlu0 0
          %1100 = vperm.xlu0 %1099, %v1082
          %v1101 = vpop.permute.xlu0 %1100
          %v1103 = vsub.f32 %v674, %v1086
          %v1104 = vsub.f32 %v693, %v1086
          %v1105 = vsub.f32 %v712, %v1086
          %v1106 = vsub.f32 %v731, %v1086
          %v1107 = vsub.f32 %v750, %v1086
          %v1108 = vsub.f32 %v769, %v1086
          %v1109 = vsub.f32 %v788, %v1086
          %v1110 = vsub.f32 %v807, %v1086
          %v1111 = vsub.f32 %v676, %v1091
          %v1112 = vsub.f32 %v695, %v1091
          %v1113 = vsub.f32 %v714, %v1091
          %v1114 = vsub.f32 %v733, %v1091
          %v1115 = vsub.f32 %v752, %v1091
          %v1116 = vsub.f32 %v771, %v1091
          %v1117 = vsub.f32 %v790, %v1091
          %v1118 = vsub.f32 %v809, %v1091
          %v1119 = vsub.f32 %v679, %v1096
          %v1120 = vsub.f32 %v698, %v1096
          %v1121 = vsub.f32 %v717, %v1096
          %v1122 = vsub.f32 %v736, %v1096
          %v1123 = vsub.f32 %v755, %v1096
          %v1124 = vsub.f32 %v774, %v1096
          %v1125 = vsub.f32 %v793, %v1096
          %v1126 = vsub.f32 %v812, %v1096
          %v1127 = vsub.f32 %v681, %v1101
          %v1128 = vsub.f32 %v700, %v1101
          %v1129 = vsub.f32 %v719, %v1101
          %v1130 = vsub.f32 %v738, %v1101
          %v1131 = vsub.f32 %v757, %v1101
          %v1132 = vsub.f32 %v776, %v1101
          %v1133 = vsub.f32 %v795, %v1101
          %v1134 = vsub.f32 %v814, %v1101
          %1135 = vst [vmem:[%s219] sm:$0xff] %v1103
          %1136 = vst [vmem:[%s219 + $0x8] sm:$0xff] %v1104
          %1137 = vst [vmem:[%s219 + $0x10] sm:$0xff] %v1105
          %1138 = vst [vmem:[%s219 + $0x18] sm:$0xff] %v1106
          %1139 = vst [vmem:[%s219 + $0x20] sm:$0xff] %v1107
          %1140 = vst [vmem:[%s219 + $0x28] sm:$0xff] %v1108
          %1141 = vst [vmem:[%s219 + $0x30] sm:$0xff] %v1109
          %1142 = vst [vmem:[%s219 + $0x38] sm:$0xff] %v1110
          %1143 = vst [vmem:[%s219 + $0x40] sm:$0xff] %v1111
          %1144 = vst [vmem:[%s219 + $0x48] sm:$0xff] %v1112
          %1145 = vst [vmem:[%s219 + $0x50] sm:$0xff] %v1113
          %1146 = vst [vmem:[%s219 + $0x58] sm:$0xff] %v1114
          %1147 = vst [vmem:[%s219 + $0x60] sm:$0xff] %v1115
          %1148 = vst [vmem:[%s219 + $0x68] sm:$0xff] %v1116
          %1149 = vst [vmem:[%s219 + $0x70] sm:$0xff] %v1117
          %1150 = vst [vmem:[%s219 + $0x78] sm:$0xff] %v1118
          %1151 = vst [vmem:[%s219 + $0x80] sm:$0xff] %v1119
          %1152 = vst [vmem:[%s219 + $0x88] sm:$0xff] %v1120
          %1153 = vst [vmem:[%s219 + $0x90] sm:$0xff] %v1121
          %1154 = vst [vmem:[%s219 + $0x98] sm:$0xff] %v1122
          %1155 = vst [vmem:[%s219 + $0xa0] sm:$0xff] %v1123
          %1156 = vst [vmem:[%s219 + $0xa8] sm:$0xff] %v1124
          %1157 = vst [vmem:[%s219 + $0xb0] sm:$0xff] %v1125
          %1158 = vst [vmem:[%s219 + $0xb8] sm:$0xff] %v1126
          %1159 = vst [vmem:[%s219 + $0xc0] sm:$0xff] %v1127
          %1160 = vst [vmem:[%s219 + $0xc8] sm:$0xff] %v1128
          %1161 = vst [vmem:[%s219 + $0xd0] sm:$0xff] %v1129
          %1162 = vst [vmem:[%s219 + $0xd8] sm:$0xff] %v1130
          %1163 = vst [vmem:[%s219 + $0xe0] sm:$0xff] %v1131
          %1164 = vst [vmem:[%s219 + $0xe8] sm:$0xff] %v1132
          %1165 = vst [vmem:[%s219 + $0xf0] sm:$0xff] %v1133
          %1166 = vst [vmem:[%s219 + $0xf8] sm:$0xff] %v1134
        $region48: #{gmlp_language_model.3} parent=31 // pred_fallthru
          _
        %s1167 = sand.u32 %s126, 1
        %s1168 = scalar_lea.sflag [#allocation5], %s1167
        %s1169 = sand.u32 %s126, 1
        %s1170 = smul.addr %s1169, 256
        %s1171 = scalar_lea.vmem [#allocation4], %s1170
        // Predicated region
        $region49: #{gmlp_language_model.3} parent=31 // pred_check
          %p1172 = pneg %p136
        $region50: #{gmlp_language_model.3} parent=31 // pred_check_branch
          %1174 = sbr.rel (%p1172) target = $region52
        $region51: #{gmlp_language_model.3} parent=31 // pred_region
          %s1175 = smul.u32 %s24, %s23
          %s1176 = smul.u32 2, %s22
          %s1177 = smul.u32 8, %s1175
          %1179 = vsyncadd %s1168, 0
          %s1180 = smul.addr %s1176, 16
          %s1181 = sadd.s32 %s1177, %s1180
          %s1182 = smul.addr %s1181, 8
          %s1183 = scalar_lea.hbm %s3, %s1182
          %s1184 = sshll.u32 %s1171, 4
          %s1185 = int_to_ptr.vmem [resolvable:$true] %s1184
          %s1186 = sshll.u32 %s1183, 4
          %s1187 = int_to_ptr.hbm [resolvable:$true] %s1186
          %1192 = dma.vmem_to_hbm [thread:$0]  %s1185, 4096, %s1187, %s1168, 1024, 1024, 64
        $region52: #{gmlp_language_model.3} parent=31 // pred_fallthru
          _
      $region32: #{gmlp_language_model.3} parent=5 // pred_fallthru
        _
      %p1193 = scmp.le.s32.totalorder 2, %s12
      // Predicated region
      $region53: #{gmlp_language_model.3} parent=5 // pred_check
        %p1194 = pneg %p1193
      $region54: #{gmlp_language_model.3} parent=5 // pred_check_branch
        %1196 = sbr.rel (%p1194) target = $region56
      $region55: #{gmlp_language_model.3} parent=5 // pred_region
        %s1197 = ssub.s32 %s12, 2
        // Predicated region
        $region57: #{gmlp_language_model.3} parent=55 // pred_check
          %p1198 = pneg %p142
        $region58: #{gmlp_language_model.3} parent=55 // pred_check_branch
          %1200 = sbr.rel (%p1198) target = $region60
        $region59: #{gmlp_language_model.3} parent=55 // pred_region
          %s1201 = sand.u32 %s127, 1
          %s1202 = scalar_lea.sflag [#allocation5], %s1201
          %s1203 = sand.u32 %s127, 1
          %s1204 = smul.addr %s1203, 256
          %s1205 = scalar_lea.vmem [#allocation4], %s1204
          %1207 = dma.done %s1202, 4096
        $region60: #{gmlp_language_model.3} parent=55 // pred_fallthru
          _
      $region56: #{gmlp_language_model.3} parent=5 // pred_fallthru
        _
    $region6: #{gmlp_language_model.3} parent=1 // loop_footer
      %s16 = sadd.s32 1, %s12
    $region7: #{gmlp_language_model.3} parent=1 // loop_footer_branch
      %11 = sbr.rel target = $region3
    $region8: #{gmlp_language_model.3} parent=1 // loop_exit
      _
    %1208 = vsyncpa [#allocation5], 1
    %s1209 = scalar_lea.sflag [#allocation5], 1
    %1210 = vsyncpa %s1209, 1

// kernel: gmlp_language_model.2
$region0: #{gmlp_language_model.2}
  #allocation0 [shape = 'u32[]', space=smem, size = 0x4, offset = 0x4, fixed_abs, tag = 'smem constant byte address 0x4 - core index']
  #allocation1 [shape = 'u32[72,128]{1,0:T(1,128)}', space=vmem, size = 0x9000, scoped, tag = 'internal scratch']
  %s0 = inlined_call_operand.vmem [shape: f32[4,16,128], index: 0, kind: input, shape index: {}]
  %s1 = inlined_call_operand.vmem [shape: f32[2,1,128], index: 1, kind: input, shape index: {}]
  %s2 = inlined_call_operand.vmem [shape: f32[2,1,128], index: 2, kind: input, shape index: {}]
  %s3 = inlined_call_operand.hbm [shape: bf16[2,128,256], index: 3, kind: input, shape index: {}]
  %s4 = inlined_call_operand.vmem [shape: f32[2,1,256], index: 4, kind: input, shape index: {}]
  %s5 = inlined_call_operand.vmem [shape: f32[2,1,128], index: 5, kind: input, shape index: {}]
  %s6 = inlined_call_operand.vmem [shape: f32[2,1,128], index: 6, kind: input, shape index: {}]
  %s7 = inlined_call_operand.vmem [shape: bf16[2,16,16], index: 7, kind: input, shape index: {}]
  %s8 = inlined_call_operand.vmem [shape: f32[2,16,1], index: 8, kind: input, shape index: {}]
  %s9 = inlined_call_operand.vmem [shape: bf16[2,128,128], index: 9, kind: input, shape index: {}]
  %s10 = inlined_call_operand.vmem [shape: f32[2,1,128], index: 10, kind: input, shape index: {}]
  %s11 = inlined_call_operand.vmem [shape: f32[4,16,128], index: 11, kind: output, shape index: {}]
  %s12 = sld [smem:[#allocation0]]
  $region85: #{gmlp_language_model.2} parent=0
    _
  %s14 = ssub.s32 1, %s12
  %s15 = scalar_select 0, %s14, %s12
  $region1: #{gmlp_language_model.2} parent=0
    #allocation2 [shape = 'u8[131072]{0}', space=vmem, size = 0x20000, scoped, tag = 'input window, operand 3, single buffered']
    #allocation3 [shape = 's32[2]{0}', space=sflag, size = 0x8, scoped, tag = 'scoped memory for gmlp_language_model.2']
    %16 = vsyncpa [#allocation3], 0
    loop: start=0, step=1, limit=6
    $region2: #{gmlp_language_model.2} parent=1 // loop_pre_header
      _
    $region3: #{gmlp_language_model.2} parent=1 // loop_header
      %s18 = sphi 0, %s22
      %p19 = scmp.ge.s32.totalorder %s18, 6
      %s25 = sphi 0, %s37
      %s26 = sphi 0, %s33
      %s27 = sphi 0, %s25
      %s28 = sphi 0, %s26
      %s29 = sphi 0, %s27
      %s30 = sphi 0, %s28
      %s40 = sphi 0, %s42
      %s43 = sphi 0, %s40
      %s44 = sphi 0, %s43
      %s60 = sphi 0, %s44
      %s64 = sphi 0, %s64
      %s66 = sphi 0, %s64
      %s67 = sphi 0, %s66
      %s81 = sphi 0, %s67
      %s85 = sphi 0, %s85
      %s87 = sphi 0, %s85
      %s88 = sphi 0, %s87
      %s102 = sphi 0, %s88
      %s106 = sphi 0, %s106
      %s108 = sphi 0, %s106
      %s109 = sphi 0, %s108
      %s123 = sphi 0, %s109
      %s127 = sphi 0, %s127
      %s129 = sphi 0, %s127
      %s130 = sphi 0, %s129
      %s144 = sphi 0, %s130
      %s148 = sphi 0, %s148
      %s150 = sphi 0, %s148
      %s151 = sphi 0, %s150
      %s165 = sphi 0, %s151
      %s169 = sphi 0, %s169
      %s171 = sphi 0, %s169
      %s172 = sphi 0, %s171
      %s186 = sphi 0, %s172
      %s190 = sphi 0, %s190
      %s192 = sphi 0, %s190
      %s193 = sphi 0, %s192
      %s207 = sphi 0, %s193
      %s211 = sphi 0, %s211
      %s213 = sphi 0, %s211
      %s214 = sphi 0, %s213
      %s228 = sphi 0, %s214
      %s232 = sphi 0, %s232
      %s234 = sphi 0, %s232
      %s235 = sphi 0, %s234
      %s249 = sphi 0, %s235
      %s253 = sphi 0, %s253
      %s255 = sphi 0, %s253
      %s256 = sphi 0, %s255
      %s270 = sphi 0, %s256
      %s276 = sphi 0, %s278
      %s279 = sphi 0, %s276
      %s280 = sphi 0, %s279
      %s296 = sphi 0, %s280
    $region4: #{gmlp_language_model.2} parent=1 // loop_header_branch
      %21 = sbr.rel (%p19) target = $region8
    $region5: #{gmlp_language_model.2} parent=1 // loop_body
      %s23 = ssub.s32 %s18, 1
      %s24 = ssub.s32 %s18, 2
      %s31 = sadd.s32 1, %s26
      %p32 = scmp.ge.s32.totalorder %s31, 2
      %s33 = scalar_select %p32, 0, %s31
      %s34 = sadd.s32 1, %s25
      %s35 = scalar_select %p32, %s34, %s25
      %p36 = scmp.ge.s32.totalorder %s35, 2
      %s37 = scalar_select %p36, 0, %s35
      %s38 = ssub.s32 %s25, %s37
      %p39 = scmp.eq.s32.totalorder %s38, 0
      %s41 = sadd.s32 %s40, 1
      %s42 = scalar_select %p39, %s40, %s41
      %p45 = pneg %p39
      %p46 = scmp.eq.s32.totalorder %s18, 3
      %p47 = por %p45, %p46
      %p48 = scmp.ne.s32.totalorder %s40, %s43
      %p49 = scmp.eq.s32.totalorder %s18, 0
      %p50 = por %p48, %p49
      %p51 = scmp.ne.s32.totalorder %s40, %s43
      %p52 = scmp.eq.s32.totalorder %s23, 3
      %p53 = por %p51, %p52
      %p54 = scmp.ne.s32.totalorder %s43, %s44
      %p55 = scmp.eq.s32.totalorder %s23, 0
      %p56 = por %p54, %p55
      %p57 = scmp.ne.s32.totalorder %s43, %s44
      %p58 = scmp.eq.s32.totalorder %s24, 3
      %p59 = por %p57, %p58
      %p61 = scmp.ne.s32.totalorder %s44, %s60
      %p62 = scmp.eq.s32.totalorder %s24, 0
      %p63 = por %p61, %p62
      %s65 = sadd.s32 %s64, 1
      %p68 = scmp.eq.s32.totalorder %s18, 3
      %p69 = scmp.ne.s32.totalorder %s64, %s66
      %p70 = scmp.eq.s32.totalorder %s18, 0
      %p71 = por %p69, %p70
      %p72 = scmp.ne.s32.totalorder %s64, %s66
      %p73 = scmp.eq.s32.totalorder %s23, 3
      %p74 = por %p72, %p73
      %p75 = scmp.ne.s32.totalorder %s66, %s67
      %p76 = scmp.eq.s32.totalorder %s23, 0
      %p77 = por %p75, %p76
      %p78 = scmp.ne.s32.totalorder %s66, %s67
      %p79 = scmp.eq.s32.totalorder %s24, 3
      %p80 = por %p78, %p79
      %p82 = scmp.ne.s32.totalorder %s67, %s81
      %p83 = scmp.eq.s32.totalorder %s24, 0
      %p84 = por %p82, %p83
      %s86 = sadd.s32 %s85, 1
      %p89 = scmp.eq.s32.totalorder %s18, 3
      %p90 = scmp.ne.s32.totalorder %s85, %s87
      %p91 = scmp.eq.s32.totalorder %s18, 0
      %p92 = por %p90, %p91
      %p93 = scmp.ne.s32.totalorder %s85, %s87
      %p94 = scmp.eq.s32.totalorder %s23, 3
      %p95 = por %p93, %p94
      %p96 = scmp.ne.s32.totalorder %s87, %s88
      %p97 = scmp.eq.s32.totalorder %s23, 0
      %p98 = por %p96, %p97
      %p99 = scmp.ne.s32.totalorder %s87, %s88
      %p100 = scmp.eq.s32.totalorder %s24, 3
      %p101 = por %p99, %p100
      %p103 = scmp.ne.s32.totalorder %s88, %s102
      %p104 = scmp.eq.s32.totalorder %s24, 0
      %p105 = por %p103, %p104
      %s107 = sadd.s32 %s106, 1
      %p110 = scmp.eq.s32.totalorder %s18, 3
      %p111 = scmp.ne.s32.totalorder %s106, %s108
      %p112 = scmp.eq.s32.totalorder %s18, 0
      %p113 = por %p111, %p112
      %p114 = scmp.ne.s32.totalorder %s106, %s108
      %p115 = scmp.eq.s32.totalorder %s23, 3
      %p116 = por %p114, %p115
      %p117 = scmp.ne.s32.totalorder %s108, %s109
      %p118 = scmp.eq.s32.totalorder %s23, 0
      %p119 = por %p117, %p118
      %p120 = scmp.ne.s32.totalorder %s108, %s109
      %p121 = scmp.eq.s32.totalorder %s24, 3
      %p122 = por %p120, %p121
      %p124 = scmp.ne.s32.totalorder %s109, %s123
      %p125 = scmp.eq.s32.totalorder %s24, 0
      %p126 = por %p124, %p125
      %s128 = sadd.s32 %s127, 1
      %p131 = scmp.eq.s32.totalorder %s18, 3
      %p132 = scmp.ne.s32.totalorder %s127, %s129
      %p133 = scmp.eq.s32.totalorder %s18, 0
      %p134 = por %p132, %p133
      %p135 = scmp.ne.s32.totalorder %s127, %s129
      %p136 = scmp.eq.s32.totalorder %s23, 3
      %p137 = por %p135, %p136
      %p138 = scmp.ne.s32.totalorder %s129, %s130
      %p139 = scmp.eq.s32.totalorder %s23, 0
      %p140 = por %p138, %p139
      %p141 = scmp.ne.s32.totalorder %s129, %s130
      %p142 = scmp.eq.s32.totalorder %s24, 3
      %p143 = por %p141, %p142
      %p145 = scmp.ne.s32.totalorder %s130, %s144
      %p146 = scmp.eq.s32.totalorder %s24, 0
      %p147 = por %p145, %p146
      %s149 = sadd.s32 %s148, 1
      %p152 = scmp.eq.s32.totalorder %s18, 3
      %p153 = scmp.ne.s32.totalorder %s148, %s150
      %p154 = scmp.eq.s32.totalorder %s18, 0
      %p155 = por %p153, %p154
      %p156 = scmp.ne.s32.totalorder %s148, %s150
      %p157 = scmp.eq.s32.totalorder %s23, 3
      %p158 = por %p156, %p157
      %p159 = scmp.ne.s32.totalorder %s150, %s151
      %p160 = scmp.eq.s32.totalorder %s23, 0
      %p161 = por %p159, %p160
      %p162 = scmp.ne.s32.totalorder %s150, %s151
      %p163 = scmp.eq.s32.totalorder %s24, 3
      %p164 = por %p162, %p163
      %p166 = scmp.ne.s32.totalorder %s151, %s165
      %p167 = scmp.eq.s32.totalorder %s24, 0
      %p168 = por %p166, %p167
      %s170 = sadd.s32 %s169, 1
      %p173 = scmp.eq.s32.totalorder %s18, 3
      %p174 = scmp.ne.s32.totalorder %s169, %s171
      %p175 = scmp.eq.s32.totalorder %s18, 0
      %p176 = por %p174, %p175
      %p177 = scmp.ne.s32.totalorder %s169, %s171
      %p178 = scmp.eq.s32.totalorder %s23, 3
      %p179 = por %p177, %p178
      %p180 = scmp.ne.s32.totalorder %s171, %s172
      %p181 = scmp.eq.s32.totalorder %s23, 0
      %p182 = por %p180, %p181
      %p183 = scmp.ne.s32.totalorder %s171, %s172
      %p184 = scmp.eq.s32.totalorder %s24, 3
      %p185 = por %p183, %p184
      %p187 = scmp.ne.s32.totalorder %s172, %s186
      %p188 = scmp.eq.s32.totalorder %s24, 0
      %p189 = por %p187, %p188
      %s191 = sadd.s32 %s190, 1
      %p194 = scmp.eq.s32.totalorder %s18, 3
      %p195 = scmp.ne.s32.totalorder %s190, %s192
      %p196 = scmp.eq.s32.totalorder %s18, 0
      %p197 = por %p195, %p196
      %p198 = scmp.ne.s32.totalorder %s190, %s192
      %p199 = scmp.eq.s32.totalorder %s23, 3
      %p200 = por %p198, %p199
      %p201 = scmp.ne.s32.totalorder %s192, %s193
      %p202 = scmp.eq.s32.totalorder %s23, 0
      %p203 = por %p201, %p202
      %p204 = scmp.ne.s32.totalorder %s192, %s193
      %p205 = scmp.eq.s32.totalorder %s24, 3
      %p206 = por %p204, %p205
      %p208 = scmp.ne.s32.totalorder %s193, %s207
      %p209 = scmp.eq.s32.totalorder %s24, 0
      %p210 = por %p208, %p209
      %s212 = sadd.s32 %s211, 1
      %p215 = scmp.eq.s32.totalorder %s18, 3
      %p216 = scmp.ne.s32.totalorder %s211, %s213
      %p217 = scmp.eq.s32.totalorder %s18, 0
      %p218 = por %p216, %p217
      %p219 = scmp.ne.s32.totalorder %s211, %s213
      %p220 = scmp.eq.s32.totalorder %s23, 3
      %p221 = por %p219, %p220
      %p222 = scmp.ne.s32.totalorder %s213, %s214
      %p223 = scmp.eq.s32.totalorder %s23, 0
      %p224 = por %p222, %p223
      %p225 = scmp.ne.s32.totalorder %s213, %s214
      %p226 = scmp.eq.s32.totalorder %s24, 3
      %p227 = por %p225, %p226
      %p229 = scmp.ne.s32.totalorder %s214, %s228
      %p230 = scmp.eq.s32.totalorder %s24, 0
      %p231 = por %p229, %p230
      %s233 = sadd.s32 %s232, 1
      %p236 = scmp.eq.s32.totalorder %s18, 3
      %p237 = scmp.ne.s32.totalorder %s232, %s234
      %p238 = scmp.eq.s32.totalorder %s18, 0
      %p239 = por %p237, %p238
      %p240 = scmp.ne.s32.totalorder %s232, %s234
      %p241 = scmp.eq.s32.totalorder %s23, 3
      %p242 = por %p240, %p241
      %p243 = scmp.ne.s32.totalorder %s234, %s235
      %p244 = scmp.eq.s32.totalorder %s23, 0
      %p245 = por %p243, %p244
      %p246 = scmp.ne.s32.totalorder %s234, %s235
      %p247 = scmp.eq.s32.totalorder %s24, 3
      %p248 = por %p246, %p247
      %p250 = scmp.ne.s32.totalorder %s235, %s249
      %p251 = scmp.eq.s32.totalorder %s24, 0
      %p252 = por %p250, %p251
      %s254 = sadd.s32 %s253, 1
      %p257 = scmp.eq.s32.totalorder %s18, 3
      %p258 = scmp.ne.s32.totalorder %s253, %s255
      %p259 = scmp.eq.s32.totalorder %s18, 0
      %p260 = por %p258, %p259
      %p261 = scmp.ne.s32.totalorder %s253, %s255
      %p262 = scmp.eq.s32.totalorder %s23, 3
      %p263 = por %p261, %p262
      %p264 = scmp.ne.s32.totalorder %s255, %s256
      %p265 = scmp.eq.s32.totalorder %s23, 0
      %p266 = por %p264, %p265
      %p267 = scmp.ne.s32.totalorder %s255, %s256
      %p268 = scmp.eq.s32.totalorder %s24, 3
      %p269 = por %p267, %p268
      %p271 = scmp.ne.s32.totalorder %s256, %s270
      %p272 = scmp.eq.s32.totalorder %s24, 0
      %p273 = por %p271, %p272
      %s274 = ssub.s32 %s25, %s37
      %p275 = scmp.eq.s32.totalorder %s274, 0
      %s277 = sadd.s32 %s276, 1
      %s278 = scalar_select %p275, %s276, %s277
      %p281 = pneg %p275
      %p282 = scmp.eq.s32.totalorder %s18, 3
      %p283 = por %p281, %p282
      %p284 = scmp.ne.s32.totalorder %s276, %s279
      %p285 = scmp.eq.s32.totalorder %s18, 0
      %p286 = por %p284, %p285
      %p287 = scmp.ne.s32.totalorder %s276, %s279
      %p288 = scmp.eq.s32.totalorder %s23, 3
      %p289 = por %p287, %p288
      %p290 = scmp.ne.s32.totalorder %s279, %s280
      %p291 = scmp.eq.s32.totalorder %s23, 0
      %p292 = por %p290, %p291
      %p293 = scmp.ne.s32.totalorder %s279, %s280
      %p294 = scmp.eq.s32.totalorder %s24, 3
      %p295 = por %p293, %p294
      %p297 = scmp.ne.s32.totalorder %s280, %s296
      %p298 = scmp.eq.s32.totalorder %s24, 0
      %p299 = por %p297, %p298
      %p300 = scmp.le.s32.totalorder 1, %s18
      %p301 = scmp.lt.s32.totalorder %s18, 5
      %p302 = pnand %p300, %p301
      %p303 = pneg %p302
      // Predicated region
      $region9: #{gmlp_language_model.2} parent=5 // pred_check
        _
      $region10: #{gmlp_language_model.2} parent=5 // pred_check_branch
        %305 = sbr.rel (%p302) target = $region12
      $region11: #{gmlp_language_model.2} parent=5 // pred_region
        %s306 = ssub.s32 %s18, 1
        // Predicated region
        $region13: #{gmlp_language_model.2} parent=11 // pred_check
          %p307 = pneg %p77
        $region14: #{gmlp_language_model.2} parent=11 // pred_check_branch
          %309 = sbr.rel (%p307) target = $region16
        $region15: #{gmlp_language_model.2} parent=11 // pred_region
          _
        $region16: #{gmlp_language_model.2} parent=11 // pred_fallthru
          _
        // Predicated region
        $region17: #{gmlp_language_model.2} parent=11 // pred_check
          %p310 = pneg %p98
        $region18: #{gmlp_language_model.2} parent=11 // pred_check_branch
          %312 = sbr.rel (%p310) target = $region20
        $region19: #{gmlp_language_model.2} parent=11 // pred_region
          _
        $region20: #{gmlp_language_model.2} parent=11 // pred_fallthru
          _
        // Predicated region
        $region21: #{gmlp_language_model.2} parent=11 // pred_check
          %p313 = pneg %p119
        $region22: #{gmlp_language_model.2} parent=11 // pred_check_branch
          %315 = sbr.rel (%p313) target = $region24
        $region23: #{gmlp_language_model.2} parent=11 // pred_region
          %317 = vsyncadd [#allocation3], 0
          %s318 = sshll.u32 %s3, 4
          %s319 = int_to_ptr.hbm [resolvable:$true] %s318
          %s320 = sshll.u32 [#allocation2], 4
          %s321 = int_to_ptr.vmem [resolvable:$true] %s320
          %326 = dma.hbm_to_vmem [thread:$0]  %s319, 4096, %s321, [#allocation3], 128, 128, 8
        $region24: #{gmlp_language_model.2} parent=11 // pred_fallthru
          _
        // Predicated region
        $region25: #{gmlp_language_model.2} parent=11 // pred_check
          %p327 = pneg %p140
        $region26: #{gmlp_language_model.2} parent=11 // pred_check_branch
          %329 = sbr.rel (%p327) target = $region28
        $region27: #{gmlp_language_model.2} parent=11 // pred_region
          _
        $region28: #{gmlp_language_model.2} parent=11 // pred_fallthru
          _
        // Predicated region
        $region29: #{gmlp_language_model.2} parent=11 // pred_check
          %p330 = pneg %p161
        $region30: #{gmlp_language_model.2} parent=11 // pred_check_branch
          %332 = sbr.rel (%p330) target = $region32
        $region31: #{gmlp_language_model.2} parent=11 // pred_region
          _
        $region32: #{gmlp_language_model.2} parent=11 // pred_fallthru
          _
        // Predicated region
        $region33: #{gmlp_language_model.2} parent=11 // pred_check
          %p333 = pneg %p182
        $region34: #{gmlp_language_model.2} parent=11 // pred_check_branch
          %335 = sbr.rel (%p333) target = $region36
        $region35: #{gmlp_language_model.2} parent=11 // pred_region
          _
        $region36: #{gmlp_language_model.2} parent=11 // pred_fallthru
          _
        // Predicated region
        $region37: #{gmlp_language_model.2} parent=11 // pred_check
          %p336 = pneg %p203
        $region38: #{gmlp_language_model.2} parent=11 // pred_check_branch
          %338 = sbr.rel (%p336) target = $region40
        $region39: #{gmlp_language_model.2} parent=11 // pred_region
          _
        $region40: #{gmlp_language_model.2} parent=11 // pred_fallthru
          _
        // Predicated region
        $region41: #{gmlp_language_model.2} parent=11 // pred_check
          %p339 = pneg %p224
        $region42: #{gmlp_language_model.2} parent=11 // pred_check_branch
          %341 = sbr.rel (%p339) target = $region44
        $region43: #{gmlp_language_model.2} parent=11 // pred_region
          _
        $region44: #{gmlp_language_model.2} parent=11 // pred_fallthru
          _
        // Predicated region
        $region45: #{gmlp_language_model.2} parent=11 // pred_check
          %p342 = pneg %p245
        $region46: #{gmlp_language_model.2} parent=11 // pred_check_branch
          %344 = sbr.rel (%p342) target = $region48
        $region47: #{gmlp_language_model.2} parent=11 // pred_region
          _
        $region48: #{gmlp_language_model.2} parent=11 // pred_fallthru
          _
        // Predicated region
        $region49: #{gmlp_language_model.2} parent=11 // pred_check
          %p345 = pneg %p266
        $region50: #{gmlp_language_model.2} parent=11 // pred_check_branch
          %347 = sbr.rel (%p345) target = $region52
        $region51: #{gmlp_language_model.2} parent=11 // pred_region
          _
        $region52: #{gmlp_language_model.2} parent=11 // pred_fallthru
          _
      $region12: #{gmlp_language_model.2} parent=5 // pred_fallthru
        _
      %p348 = scmp.lt.s32.totalorder %s18, 4
      // Predicated region
      $region53: #{gmlp_language_model.2} parent=5 // pred_check
        %p349 = pneg %p348
      $region54: #{gmlp_language_model.2} parent=5 // pred_check_branch
        %351 = sbr.rel (%p349) target = $region56
      $region55: #{gmlp_language_model.2} parent=5 // pred_region
        // Predicated region
        $region57: #{gmlp_language_model.2} parent=55 // pred_check
          %p352 = pneg %p50
        $region58: #{gmlp_language_model.2} parent=55 // pred_check_branch
          %354 = sbr.rel (%p352) target = $region60
        $region59: #{gmlp_language_model.2} parent=55 // pred_region
          %s355 = smul.u32 2, %s25
          %p356 = scmp.lt.s32.totalorder %s355, 3
          %s357 = scalar_select %p356, %s355, 3
          %s358 = smul.addr %s357, 2
          %s359 = smul.addr %s358, 8
          %s360 = scalar_lea.vmem %s0, %s359
          %s361 = smul.u32 2, %s25
        $region60: #{gmlp_language_model.2} parent=55 // pred_fallthru
          _
      $region56: #{gmlp_language_model.2} parent=5 // pred_fallthru
        _
      %p362 = scmp.le.s32.totalorder 1, %s18
      %p363 = scmp.lt.s32.totalorder %s18, 5
      %p364 = pnand %p362, %p363
      %p365 = pneg %p364
      // Predicated region
      $region61: #{gmlp_language_model.2} parent=5 // pred_check
        _
      $region62: #{gmlp_language_model.2} parent=5 // pred_check_branch
        %367 = sbr.rel (%p364) target = $region64
      $region63: #{gmlp_language_model.2} parent=5 // pred_region
        %s368 = ssub.s32 %s18, 1
        // Predicated region
        $region65: #{gmlp_language_model.2} parent=63 // pred_check
          %p369 = pneg %p119
        $region66: #{gmlp_language_model.2} parent=63 // pred_check_branch
          %371 = sbr.rel (%p369) target = $region68
        $region67: #{gmlp_language_model.2} parent=63 // pred_region
          %373 = dma.done [#allocation3], 4096
        $region68: #{gmlp_language_model.2} parent=63 // pred_fallthru
          _
        %s374 = smul.u32 2, %s27
        %p375 = scmp.lt.s32.totalorder %s374, 3
        %s376 = scalar_select %p375, %s374, 3
        %s377 = smul.addr %s376, 2
        %s378 = smul.addr %s377, 8
        %s379 = scalar_lea.vmem %s0, %s378
        %p380 = pneg %p56
        %p381 = pneg %p53
        %p382 = pneg %p77
        %p383 = pneg %p74
        %p384 = pneg %p98
        %p385 = pneg %p95
        %p386 = pneg %p119
        %p387 = pneg %p116
        %p388 = pneg %p140
        %p389 = pneg %p137
        %p390 = pneg %p161
        %p391 = pneg %p158
        %p392 = pneg %p182
        %p393 = pneg %p179
        %p394 = pneg %p203
        %p395 = pneg %p200
        %p396 = pneg %p224
        %p397 = pneg %p221
        %p398 = pneg %p245
        %p399 = pneg %p242
        %p400 = pneg %p266
        %p401 = pneg %p263
        %p402 = pneg %p292
        %p403 = pneg %p289
        %s404 = smul.u32 2, %s27
        %p405 = scmp.lt.s32.totalorder %s404, 3
        %s406 = scalar_select %p405, %s404, 3
        %s407 = smul.addr %s406, 2
        %s408 = smul.addr %s407, 8
        %s409 = scalar_lea.vmem %s11, %s408
        %s410 = smul.u32 2, %s27
        %p411 = scmp.lt.s32.totalorder %s410, 3
        %s412 = scalar_select %p411, %s410, 3
        %s413 = smul.addr %s412, 2
        %s414 = smul.addr %s413, 8
        %s415 = scalar_lea.vmem %s0, %s414
        %s416 = smul.u32 2, %s27
        %s417 = smul.u32 2, %s27
        %p418 = scmp.lt.s32.totalorder %s417, 3
        %s419 = scalar_select %p418, %s417, 3
        %s420 = smul.addr %s419, 2
        %s421 = smul.addr %s420, 8
        %s422 = scalar_lea.vmem %s11, %s421
        %s423 = smul.u32 2, %s27
        %p425 = scmp.eq.s32.totalorder %s28, 0
        // Predicated region
        $region69: #{gmlp_language_model.2} parent=63 // pred_check
          %p426 = pneg %p425
        $region70: #{gmlp_language_model.2} parent=63 // pred_check_branch
          %428 = sbr.rel (%p426) target = $region72
        $region71: #{gmlp_language_model.2} parent=63 // pred_region
          %v429 = vld [vmem:[%s415] sm:$0xff]
          %v430 = vld [vmem:[%s415 + $0x8] sm:$0xff]
          %v431 = vld [vmem:[%s415 + $0x10] sm:$0xff]
          %v432 = vld [vmem:[%s415 + $0x18] sm:$0xff]
          %433 = vst [vmem:[%s422] sm:$0xff] %v429
          %434 = vst [vmem:[%s422 + $0x8] sm:$0xff] %v430
          %435 = vst [vmem:[%s422 + $0x10] sm:$0xff] %v431
          %436 = vst [vmem:[%s422 + $0x18] sm:$0xff] %v432
        $region72: #{gmlp_language_model.2} parent=63 // pred_fallthru
          _
        %v437 = vld [vmem:[%s422] sm:$0xff]
        %v438 = vld [vmem:[%s422 + $0x8] sm:$0xff]
        %v439 = vld [vmem:[%s422 + $0x10] sm:$0xff]
        %v440 = vld [vmem:[%s422 + $0x18] sm:$0xff]
        %s441 = scalar_lea.vmem %s1, %s28
        %v442 = vld [vmem:[%s441] sm:$0x1]
        %s443 = scalar_lea.vmem %s2, %s28
        %v444 = vld [vmem:[%s443] sm:$0x1]
        %445 = vadd.xlane.f32.xlu0 %v437
        %v446 = vpop.xlane.xlu0 %445
        %447 = vadd.xlane.f32.xlu0 %v438
        %v448 = vpop.xlane.xlu0 %447
        %449 = vadd.xlane.f32.xlu0 %v439
        %v450 = vpop.xlane.xlu0 %449
        %451 = vadd.xlane.f32.xlu0 %v440
        %v452 = vpop.xlane.xlu0 %451
        %v453 = vrcp.pop 128.0
        %v454 = vmul.f32 128.0, %v453
        %v455 = vsub.f32 1.0, %v454
        %v456 = vmul.f32 %v453, %v455
        %v457 = vadd.f32 %v453, %v456
        %vm458 = vweird.f32 %v453
        %v459 = vsel %vm458, %v453, %v457
        %v460 = vmul.f32 %v446, %v459
        %v461 = vmul.f32 %v448, %v459
        %v462 = vmul.f32 %v450, %v459
        %v463 = vmul.f32 %v452, %v459
        %v464 = vsub.f32 %v437, %v460
        %v465 = vsub.f32 %v438, %v461
        %v466 = vsub.f32 %v439, %v462
        %v467 = vsub.f32 %v440, %v463
        %v468 = vmul.f32 %v464, %v464
        %v469 = vmul.f32 %v465, %v465
        %v470 = vmul.f32 %v466, %v466
        %v471 = vmul.f32 %v467, %v467
        %472 = vadd.xlane.f32.xlu0 %v468
        %v473 = vpop.xlane.xlu0 %472
        %474 = vadd.xlane.f32.xlu0 %v469
        %v475 = vpop.xlane.xlu0 %474
        %476 = vadd.xlane.f32.xlu0 %v470
        %v477 = vpop.xlane.xlu0 %476
        %478 = vadd.xlane.f32.xlu0 %v471
        %v479 = vpop.xlane.xlu0 %478
        %v480 = vmul.f32 %v473, %v459
        %v481 = vmul.f32 %v475, %v459
        %v482 = vmul.f32 %v477, %v459
        %v483 = vmul.f32 %v479, %v459
        %v484 = vadd.f32 %v480, 1e-05
        %v485 = vadd.f32 %v481, 1e-05
        %v486 = vadd.f32 %v482, 1e-05
        %v487 = vadd.f32 %v483, 1e-05
        %v488 = vrsqrt.pop %v484
        %v489 = vmul.f32 %v488, %v484
        %v490 = vmul.f32 %v489, %v488
        %v491 = vmul.f32 0.5, %v490
        %v492 = vsub.f32 1.5, %v491
        %v493 = vmul.f32 %v488, %v492
        %vm494 = vweird.f32 %v484
        %vm495 = vweird.f32 %v488
        %vm496 = vmor %vm494, %vm495
        %v497 = vsel %vm496, %v488, %v493
        %v498 = vrsqrt.pop %v485
        %v499 = vmul.f32 %v498, %v485
        %v500 = vmul.f32 %v499, %v498
        %v501 = vmul.f32 0.5, %v500
        %v502 = vsub.f32 1.5, %v501
        %v503 = vmul.f32 %v498, %v502
        %vm504 = vweird.f32 %v485
        %vm505 = vweird.f32 %v498
        %vm506 = vmor %vm504, %vm505
        %v507 = vsel %vm506, %v498, %v503
        %v508 = vrsqrt.pop %v486
        %v509 = vmul.f32 %v508, %v486
        %v510 = vmul.f32 %v509, %v508
        %v511 = vmul.f32 0.5, %v510
        %v512 = vsub.f32 1.5, %v511
        %v513 = vmul.f32 %v508, %v512
        %vm514 = vweird.f32 %v486
        %vm515 = vweird.f32 %v508
        %vm516 = vmor %vm514, %vm515
        %v517 = vsel %vm516, %v508, %v513
        %v518 = vrsqrt.pop %v487
        %v519 = vmul.f32 %v518, %v487
        %v520 = vmul.f32 %v519, %v518
        %v521 = vmul.f32 0.5, %v520
        %v522 = vsub.f32 1.5, %v521
        %v523 = vmul.f32 %v518, %v522
        %vm524 = vweird.f32 %v487
        %vm525 = vweird.f32 %v518
        %vm526 = vmor %vm524, %vm525
        %v527 = vsel %vm526, %v518, %v523
        %v528 = vmul.f32 %v464, %v497
        %v529 = vmul.f32 %v465, %v507
        %v530 = vmul.f32 %v466, %v517
        %v531 = vmul.f32 %v467, %v527
        %v533 = vperm.slane %v442, 0
        %v535 = vmul.f32 %v528, %v533
        %v536 = vmul.f32 %v529, %v533
        %v537 = vmul.f32 %v530, %v533
        %v538 = vmul.f32 %v531, %v533
        %v540 = vperm.slane %v444, 0
        %v542 = vadd.f32 %v535, %v540
        %v543 = vadd.f32 %v536, %v540
        %v544 = vadd.f32 %v537, %v540
        %v545 = vadd.f32 %v538, %v540
        %v546 = vpack.c.bf16 %v543, %v542
        %v547 = vpack.c.bf16 %v545, %v544
        %s548 = smul.u32 %s28, 32
        %s549 = smul.addr %s548, 4
        %s550 = scalar_lea.vmem [#allocation2], %s549
        %v551 = vld [vmem:[%s550] sm:$0xff]
        %v552 = vld [vmem:[%s550 + $0x8] sm:$0xff]
        %v553 = vld [vmem:[%s550 + $0x10] sm:$0xff]
        %v554 = vld [vmem:[%s550 + $0x18] sm:$0xff]
        %v555 = vld [vmem:[%s550 + $0x20] sm:$0xff]
        %v556 = vld [vmem:[%s550 + $0x28] sm:$0xff]
        %v557 = vld [vmem:[%s550 + $0x30] sm:$0xff]
        %v558 = vld [vmem:[%s550 + $0x38] sm:$0xff]
        %v559 = vld [vmem:[%s550 + $0x40] sm:$0xff]
        %v560 = vld [vmem:[%s550 + $0x48] sm:$0xff]
        %v561 = vld [vmem:[%s550 + $0x50] sm:$0xff]
        %v562 = vld [vmem:[%s550 + $0x58] sm:$0xff]
        %v563 = vld [vmem:[%s550 + $0x60] sm:$0xff]
        %v564 = vld [vmem:[%s550 + $0x68] sm:$0xff]
        %v565 = vld [vmem:[%s550 + $0x70] sm:$0xff]
        %v566 = vld [vmem:[%s550 + $0x78] sm:$0xff]
        %s567 = smul.u32 %s28, 2
        %s568 = scalar_lea.vmem %s4, %s567
        %v569 = vld [vmem:[%s568] sm:$0x3]
        %v571 = vperm.slane %v569, 0
        %v572 = vperm.slane %v569, 1
        %v591 = vunpack.c.l.b16 %v551
        %v592 = vunpack.c.h.b16 %v551
        %v593 = vunpack.c.l.b16 %v552
        %v594 = vunpack.c.h.b16 %v552
        %v595 = vunpack.c.l.b16 %v553
        %v596 = vunpack.c.h.b16 %v553
        %v597 = vunpack.c.l.b16 %v554
        %v598 = vunpack.c.h.b16 %v554
        %v599 = vunpack.c.l.b16 %v555
        %v600 = vunpack.c.h.b16 %v555
        %v601 = vunpack.c.l.b16 %v556
        %v602 = vunpack.c.h.b16 %v556
        %v603 = vunpack.c.l.b16 %v557
        %v604 = vunpack.c.h.b16 %v557
        %v605 = vunpack.c.l.b16 %v558
        %v606 = vunpack.c.h.b16 %v558
        %v607 = vunpack.c.l.b16 %v559
        %v608 = vunpack.c.h.b16 %v559
        %v609 = vunpack.c.l.b16 %v560
        %v610 = vunpack.c.h.b16 %v560
        %v611 = vunpack.c.l.b16 %v561
        %v612 = vunpack.c.h.b16 %v561
        %v613 = vunpack.c.l.b16 %v562
        %v614 = vunpack.c.h.b16 %v562
        %v615 = vunpack.c.l.b16 %v563
        %v616 = vunpack.c.h.b16 %v563
        %v617 = vunpack.c.l.b16 %v564
        %v618 = vunpack.c.h.b16 %v564
        %v619 = vunpack.c.l.b16 %v565
        %v620 = vunpack.c.h.b16 %v565
        %v621 = vunpack.c.l.b16 %v566
        %v622 = vunpack.c.h.b16 %v566
        %v623 = vpack.c.b16 %v593, %v591
        %v624 = vpack.c.b16 %v594, %v592
        %v625 = vpack.c.b16 %v597, %v595
        %v626 = vpack.c.b16 %v598, %v596
        %v627 = vpack.c.b16 %v601, %v599
        %v628 = vpack.c.b16 %v602, %v600
        %v629 = vpack.c.b16 %v605, %v603
        %v630 = vpack.c.b16 %v606, %v604
        %v631 = vpack.c.b16 %v609, %v607
        %v632 = vpack.c.b16 %v610, %v608
        %v633 = vpack.c.b16 %v613, %v611
        %v634 = vpack.c.b16 %v614, %v612
        %v635 = vpack.c.b16 %v617, %v615
        %v636 = vpack.c.b16 %v618, %v616
        %v637 = vpack.c.b16 %v621, %v619
        %v638 = vpack.c.b16 %v622, %v620
        %655 = vmatpush.bf16.msra.mxu0 %v637
        %656 = vmatpush.bf16.msra.mxu0 %v635
        %657 = vmatpush.bf16.msra.mxu0 %v633
        %658 = vmatpush.bf16.msra.mxu0 %v631
        %659 = vmatpush.bf16.msra.mxu0 %v629
        %660 = vmatpush.bf16.msra.mxu0 %v627
        %661 = vmatpush.bf16.msra.mxu0 %v625
        %662 = vmatpush.bf16.msra.mxu0 %v623
        %663 = vmatmul.bf16.gmra.mxu0 %v546
        %v664 = vpop.f32.mrf.mxu0
        %v665 = vadd.f32 %v571, %v664
        %v666 = vpop.f32.mrf.mxu0
        %v667 = vadd.f32 %v571, %v666
        %668 = vmatmul.bf16.gmra.mxu0 %v547
        %v669 = vpop.f32.mrf.mxu0
        %v670 = vadd.f32 %v571, %v669
        %v671 = vpop.f32.mrf.mxu0
        %v672 = vadd.f32 %v571, %v671
        %673 = vdwg.mxu0
        %674 = vmatpush.bf16.msra.mxu0 %v638
        %675 = vmatpush.bf16.msra.mxu0 %v636
        %676 = vmatpush.bf16.msra.mxu0 %v634
        %677 = vmatpush.bf16.msra.mxu0 %v632
        %678 = vmatpush.bf16.msra.mxu0 %v630
        %679 = vmatpush.bf16.msra.mxu0 %v628
        %680 = vmatpush.bf16.msra.mxu0 %v626
        %681 = vmatpush.bf16.msra.mxu0 %v624
        %682 = vmatmul.bf16.gmra.mxu0 %v546
        %v683 = vpop.f32.mrf.mxu0
        %v684 = vadd.f32 %v572, %v683
        %v685 = vpop.f32.mrf.mxu0
        %v686 = vadd.f32 %v572, %v685
        %687 = vmatmul.bf16.gmra.mxu0 %v547
        %v688 = vpop.f32.mrf.mxu0
        %v689 = vadd.f32 %v572, %v688
        %v690 = vpop.f32.mrf.mxu0
        %v691 = vadd.f32 %v572, %v690
        %692 = vdwg.mxu0
        %v693 = vmul.f32 %v665, 0.5
        %v694 = vmul.f32 %v684, 0.5
        %v695 = vmul.f32 %v667, 0.5
        %v696 = vmul.f32 %v686, 0.5
        %v697 = vmul.f32 %v670, 0.5
        %v698 = vmul.f32 %v689, 0.5
        %v699 = vmul.f32 %v672, 0.5
        %v700 = vmul.f32 %v691, 0.5
        %v701 = vmul.f32 %v665, %v665
        %v702 = vmul.f32 %v684, %v684
        %v703 = vmul.f32 %v667, %v667
        %v704 = vmul.f32 %v686, %v686
        %v705 = vmul.f32 %v670, %v670
        %v706 = vmul.f32 %v689, %v689
        %v707 = vmul.f32 %v672, %v672
        %v708 = vmul.f32 %v691, %v691
        %v709 = vmul.f32 %v701, %v665
        %v710 = vmul.f32 %v702, %v684
        %v711 = vmul.f32 %v703, %v667
        %v712 = vmul.f32 %v704, %v686
        %v713 = vmul.f32 %v705, %v670
        %v714 = vmul.f32 %v706, %v689
        %v715 = vmul.f32 %v707, %v672
        %v716 = vmul.f32 %v708, %v691
        %v717 = vmul.f32 %v709, 0.044715
        %v718 = vmul.f32 %v710, 0.044715
        %v719 = vmul.f32 %v711, 0.044715
        %v720 = vmul.f32 %v712, 0.044715
        %v721 = vmul.f32 %v713, 0.044715
        %v722 = vmul.f32 %v714, 0.044715
        %v723 = vmul.f32 %v715, 0.044715
        %v724 = vmul.f32 %v716, 0.044715
        %v725 = vadd.f32 %v665, %v717
        %v726 = vadd.f32 %v684, %v718
        %v727 = vadd.f32 %v667, %v719
        %v728 = vadd.f32 %v686, %v720
        %v729 = vadd.f32 %v670, %v721
        %v730 = vadd.f32 %v689, %v722
        %v731 = vadd.f32 %v672, %v723
        %v732 = vadd.f32 %v691, %v724
        %v733 = vmul.f32 %v725, 0.7978846
        %v734 = vmul.f32 %v726, 0.7978846
        %v735 = vmul.f32 %v727, 0.7978846
        %v736 = vmul.f32 %v728, 0.7978846
        %v737 = vmul.f32 %v729, 0.7978846
        %v738 = vmul.f32 %v730, 0.7978846
        %v739 = vmul.f32 %v731, 0.7978846
        %v740 = vmul.f32 %v732, 0.7978846
        %v741 = vtanh.pop %v733
        %v742 = vtanh.pop %v734
        %v743 = vtanh.pop %v735
        %v744 = vtanh.pop %v736
        %v745 = vtanh.pop %v737
        %v746 = vtanh.pop %v738
        %v747 = vtanh.pop %v739
        %v748 = vtanh.pop %v740
        %v749 = vadd.f32 %v741, 1.0
        %v750 = vadd.f32 %v742, 1.0
        %v751 = vadd.f32 %v743, 1.0
        %v752 = vadd.f32 %v744, 1.0
        %v753 = vadd.f32 %v745, 1.0
        %v754 = vadd.f32 %v746, 1.0
        %v755 = vadd.f32 %v747, 1.0
        %v756 = vadd.f32 %v748, 1.0
        %v757 = vmul.f32 %v693, %v749
        %v758 = vmul.f32 %v694, %v750
        %v759 = vmul.f32 %v695, %v751
        %v760 = vmul.f32 %v696, %v752
        %v761 = vmul.f32 %v697, %v753
        %v762 = vmul.f32 %v698, %v754
        %v763 = vmul.f32 %v699, %v755
        %v764 = vmul.f32 %v700, %v756
        %s765 = scalar_lea.vmem %s5, %s28
        %v766 = vld [vmem:[%s765] sm:$0x1]
        %s767 = scalar_lea.vmem %s6, %s28
        %v768 = vld [vmem:[%s767] sm:$0x1]
        %769 = vadd.xlane.f32.xlu0 %v758
        %v770 = vpop.xlane.xlu0 %769
        %771 = vadd.xlane.f32.xlu0 %v760
        %v772 = vpop.xlane.xlu0 %771
        %773 = vadd.xlane.f32.xlu0 %v762
        %v774 = vpop.xlane.xlu0 %773
        %775 = vadd.xlane.f32.xlu0 %v764
        %v776 = vpop.xlane.xlu0 %775
        %v777 = vmul.f32 %v770, %v459
        %v778 = vmul.f32 %v772, %v459
        %v779 = vmul.f32 %v774, %v459
        %v780 = vmul.f32 %v776, %v459
        %v781 = vsub.f32 %v758, %v777
        %v782 = vsub.f32 %v760, %v778
        %v783 = vsub.f32 %v762, %v779
        %v784 = vsub.f32 %v764, %v780
        %v785 = vmul.f32 %v781, %v781
        %v786 = vmul.f32 %v782, %v782
        %v787 = vmul.f32 %v783, %v783
        %v788 = vmul.f32 %v784, %v784
        %789 = vadd.xlane.f32.xlu0 %v785
        %v790 = vpop.xlane.xlu0 %789
        %791 = vadd.xlane.f32.xlu0 %v786
        %v792 = vpop.xlane.xlu0 %791
        %793 = vadd.xlane.f32.xlu0 %v787
        %v794 = vpop.xlane.xlu0 %793
        %795 = vadd.xlane.f32.xlu0 %v788
        %v796 = vpop.xlane.xlu0 %795
        %v797 = vmul.f32 %v790, %v459
        %v798 = vmul.f32 %v792, %v459
        %v799 = vmul.f32 %v794, %v459
        %v800 = vmul.f32 %v796, %v459
        %v801 = vadd.f32 %v797, 1e-05
        %v802 = vadd.f32 %v798, 1e-05
        %v803 = vadd.f32 %v799, 1e-05
        %v804 = vadd.f32 %v800, 1e-05
        %v805 = vrsqrt.pop %v801
        %v806 = vmul.f32 %v805, %v801
        %v807 = vmul.f32 %v806, %v805
        %v808 = vmul.f32 0.5, %v807
        %v809 = vsub.f32 1.5, %v808
        %v810 = vmul.f32 %v805, %v809
        %vm811 = vweird.f32 %v801
        %vm812 = vweird.f32 %v805
        %vm813 = vmor %vm811, %vm812
        %v814 = vsel %vm813, %v805, %v810
        %v815 = vrsqrt.pop %v802
        %v816 = vmul.f32 %v815, %v802
        %v817 = vmul.f32 %v816, %v815
        %v818 = vmul.f32 0.5, %v817
        %v819 = vsub.f32 1.5, %v818
        %v820 = vmul.f32 %v815, %v819
        %vm821 = vweird.f32 %v802
        %vm822 = vweird.f32 %v815
        %vm823 = vmor %vm821, %vm822
        %v824 = vsel %vm823, %v815, %v820
        %v825 = vrsqrt.pop %v803
        %v826 = vmul.f32 %v825, %v803
        %v827 = vmul.f32 %v826, %v825
        %v828 = vmul.f32 0.5, %v827
        %v829 = vsub.f32 1.5, %v828
        %v830 = vmul.f32 %v825, %v829
        %vm831 = vweird.f32 %v803
        %vm832 = vweird.f32 %v825
        %vm833 = vmor %vm831, %vm832
        %v834 = vsel %vm833, %v825, %v830
        %v835 = vrsqrt.pop %v804
        %v836 = vmul.f32 %v835, %v804
        %v837 = vmul.f32 %v836, %v835
        %v838 = vmul.f32 0.5, %v837
        %v839 = vsub.f32 1.5, %v838
        %v840 = vmul.f32 %v835, %v839
        %vm841 = vweird.f32 %v804
        %vm842 = vweird.f32 %v835
        %vm843 = vmor %vm841, %vm842
        %v844 = vsel %vm843, %v835, %v840
        %v845 = vmul.f32 %v781, %v814
        %v846 = vmul.f32 %v782, %v824
        %v847 = vmul.f32 %v783, %v834
        %v848 = vmul.f32 %v784, %v844
        %v850 = vperm.slane %v766, 0
        %v852 = vmul.f32 %v845, %v850
        %v853 = vmul.f32 %v846, %v850
        %v854 = vmul.f32 %v847, %v850
        %v855 = vmul.f32 %v848, %v850
        %v857 = vperm.slane %v768, 0
        %v859 = vadd.f32 %v852, %v857
        %v860 = vadd.f32 %v853, %v857
        %v861 = vadd.f32 %v854, %v857
        %v862 = vadd.f32 %v855, %v857
        %v863 = vpack.c.bf16 %v859, %v859
        %v864 = vpack.c.bf16 %v860, %v860
        %v865 = vpack.c.bf16 %v861, %v861
        %v866 = vpack.c.bf16 %v862, %v862
        %s867 = smul.addr %s567, 4
        %s868 = scalar_lea.vmem %s7, %s867
        %v869 = vld [vmem:[%s868] sm:$0xf]
        %v870 = vld [vmem:[%s868 + $0x4] sm:$0xf]
        %s871 = smul.u32 %s28, 16
        %s872 = scalar_lea.vmem %s8, %s871
        %v873 = vld [vmem:[%s872] sm:$0xff]
        %v874 = vld [vmem:[%s872 + $0x8] sm:$0xff]
        %876 = vset.pattern.permute.xlu0 0
        %877 = vperm.xlu0 %876, %v873
        %v878 = vpop.permute.xlu0 %877
        %881 = vset.pattern.permute.xlu0 0
        %882 = vperm.xlu0 %881, %v874
        %v883 = vpop.permute.xlu0 %882
        %v887 = vunpack.c.l.b16 %v869
        %v888 = vunpack.c.l.b16 %v870
        %v889 = vpack.c.b16 %v888, %v887
        %v892 = vunpack.c.l.b16 %v863
        %v893 = vunpack.c.l.b16 %v864
        %v894 = vpack.c.b16 %v893, %v892
        %vm896 = vcmask 130048
        %v898 = vsel %vm896, %v889, 0
        %900 = vmatpush.bf16.msra.mxu0 0
        %901 = vmatpush.bf16.msra.mxu0 0
        %902 = vmatpush.bf16.msra.mxu0 0
        %903 = vmatpush.bf16.msra.mxu0 0
        %904 = vmatpush.bf16.msra.mxu0 0
        %905 = vmatpush.bf16.msra.mxu0 0
        %906 = vmatpush.bf16.msra.mxu0 0
        %907 = vmatpush.bf16.msra.mxu0 %v894
        %908 = vmatmul.bf16.gmra.mxu0 %v898
        %v909 = vpop.f32.mrf.mxu0
        %v910 = vadd.f32 %v878, %v909
        %v911 = vpop.f32.mrf.mxu0
        %v912 = vadd.f32 %v883, %v911
        %913 = vdwg.mxu0
        %v914 = vmul.f32 %v757, %v910
        %v915 = vmul.f32 %v759, %v912
        %v918 = vunpack.c.l.b16 %v865
        %v919 = vunpack.c.l.b16 %v866
        %v920 = vpack.c.b16 %v919, %v918
        %922 = vmatpush.bf16.msra.mxu0 0
        %923 = vmatpush.bf16.msra.mxu0 0
        %924 = vmatpush.bf16.msra.mxu0 0
        %925 = vmatpush.bf16.msra.mxu0 0
        %926 = vmatpush.bf16.msra.mxu0 0
        %927 = vmatpush.bf16.msra.mxu0 0
        %928 = vmatpush.bf16.msra.mxu0 0
        %929 = vmatpush.bf16.msra.mxu0 %v920
        %930 = vmatmul.bf16.gmra.mxu0 %v898
        %v931 = vpop.f32.mrf.mxu0
        %v932 = vadd.f32 %v878, %v931
        %v933 = vpop.f32.mrf.mxu0
        %v934 = vadd.f32 %v883, %v933
        %935 = vdwg.mxu0
        %v936 = vmul.f32 %v761, %v932
        %v937 = vmul.f32 %v763, %v934
        %v938 = vpack.c.bf16 %v915, %v914
        %v939 = vpack.c.bf16 %v937, %v936
        %s940 = smul.addr %s871, 4
        %s941 = scalar_lea.vmem %s9, %s940
        %v942 = vld [vmem:[%s941] sm:$0xf]
        %v943 = vld [vmem:[%s941 + $0x4] sm:$0xf]
        %v944 = vld [vmem:[%s941 + $0x8] sm:$0xf]
        %v945 = vld [vmem:[%s941 + $0xc] sm:$0xf]
        %v946 = vld [vmem:[%s941 + $0x10] sm:$0xf]
        %v947 = vld [vmem:[%s941 + $0x14] sm:$0xf]
        %v948 = vld [vmem:[%s941 + $0x18] sm:$0xf]
        %v949 = vld [vmem:[%s941 + $0x1c] sm:$0xf]
        %v950 = vld [vmem:[%s941 + $0x20] sm:$0xf]
        %v951 = vld [vmem:[%s941 + $0x24] sm:$0xf]
        %v952 = vld [vmem:[%s941 + $0x28] sm:$0xf]
        %v953 = vld [vmem:[%s941 + $0x2c] sm:$0xf]
        %v954 = vld [vmem:[%s941 + $0x30] sm:$0xf]
        %v955 = vld [vmem:[%s941 + $0x34] sm:$0xf]
        %v956 = vld [vmem:[%s941 + $0x38] sm:$0xf]
        %v957 = vld [vmem:[%s941 + $0x3c] sm:$0xf]
        %s958 = scalar_lea.vmem %s10, %s28
        %v959 = vld [vmem:[%s958] sm:$0x1]
        %v961 = vperm.slane %v959, 0
        %v979 = vunpack.c.l.b16 %v942
        %v980 = vunpack.c.l.b16 %v943
        %v981 = vunpack.c.l.b16 %v944
        %v982 = vunpack.c.l.b16 %v945
        %v983 = vunpack.c.l.b16 %v946
        %v984 = vunpack.c.l.b16 %v947
        %v985 = vunpack.c.l.b16 %v948
        %v986 = vunpack.c.l.b16 %v949
        %v987 = vunpack.c.l.b16 %v950
        %v988 = vunpack.c.l.b16 %v951
        %v989 = vunpack.c.l.b16 %v952
        %v990 = vunpack.c.l.b16 %v953
        %v991 = vunpack.c.l.b16 %v954
        %v992 = vunpack.c.l.b16 %v955
        %v993 = vunpack.c.l.b16 %v956
        %v994 = vunpack.c.l.b16 %v957
        %v995 = vpack.c.b16 %v980, %v979
        %v996 = vpack.c.b16 %v982, %v981
        %v997 = vpack.c.b16 %v984, %v983
        %v998 = vpack.c.b16 %v986, %v985
        %v999 = vpack.c.b16 %v988, %v987
        %v1000 = vpack.c.b16 %v990, %v989
        %v1001 = vpack.c.b16 %v992, %v991
        %v1002 = vpack.c.b16 %v994, %v993
        %1011 = vmatpush.bf16.msra.mxu0 %v1002
        %1012 = vmatpush.bf16.msra.mxu0 %v1001
        %1013 = vmatpush.bf16.msra.mxu0 %v1000
        %1014 = vmatpush.bf16.msra.mxu0 %v999
        %1015 = vmatpush.bf16.msra.mxu0 %v998
        %1016 = vmatpush.bf16.msra.mxu0 %v997
        %1017 = vmatpush.bf16.msra.mxu0 %v996
        %1018 = vmatpush.bf16.msra.mxu0 %v995
        %1019 = vmatmul.bf16.gmra.mxu0 %v938
        %v1020 = vpop.f32.mrf.mxu0
        %v1021 = vadd.f32 %v961, %v1020
        %v1022 = vpop.f32.mrf.mxu0
        %v1023 = vadd.f32 %v961, %v1022
        %1024 = vmatmul.bf16.gmra.mxu0 %v939
        %v1025 = vpop.f32.mrf.mxu0
        %v1026 = vadd.f32 %v961, %v1025
        %v1027 = vpop.f32.mrf.mxu0
        %v1028 = vadd.f32 %v961, %v1027
        %1029 = vdwg.mxu0
        %v1030 = vadd.f32 %v437, %v1021
        %v1031 = vadd.f32 %v438, %v1023
        %v1032 = vadd.f32 %v439, %v1026
        %v1033 = vadd.f32 %v440, %v1028
        %1034 = vst [vmem:[%s422] sm:$0xff] %v1030
        %1035 = vst [vmem:[%s422 + $0x8] sm:$0xff] %v1031
        %1036 = vst [vmem:[%s422 + $0x10] sm:$0xff] %v1032
        %1037 = vst [vmem:[%s422 + $0x18] sm:$0xff] %v1033
        %s1038 = smul.u32 2, %s27
        %p1039 = scmp.lt.s32.totalorder %s1038, 3
        %s1040 = scalar_select %p1039, %s1038, 3
        %s1041 = smul.addr %s1040, 2
        %s1042 = smul.addr %s1041, 8
        %s1043 = scalar_lea.vmem %s11, %s1042
        // Predicated region
        $region73: #{gmlp_language_model.2} parent=63 // pred_check
          %p1044 = pneg %p289
        $region74: #{gmlp_language_model.2} parent=63 // pred_check_branch
          %1046 = sbr.rel (%p1044) target = $region76
        $region75: #{gmlp_language_model.2} parent=63 // pred_region
          %s1047 = smul.u32 2, %s27
        $region76: #{gmlp_language_model.2} parent=63 // pred_fallthru
          _
      $region64: #{gmlp_language_model.2} parent=5 // pred_fallthru
        _
      %p1048 = scmp.le.s32.totalorder 2, %s18
      // Predicated region
      $region77: #{gmlp_language_model.2} parent=5 // pred_check
        %p1049 = pneg %p1048
      $region78: #{gmlp_language_model.2} parent=5 // pred_check_branch
        %1051 = sbr.rel (%p1049) target = $region80
      $region79: #{gmlp_language_model.2} parent=5 // pred_region
        %s1052 = ssub.s32 %s18, 2
        // Predicated region
        $region81: #{gmlp_language_model.2} parent=79 // pred_check
          %p1053 = pneg %p295
        $region82: #{gmlp_language_model.2} parent=79 // pred_check_branch
          %1055 = sbr.rel (%p1053) target = $region84
        $region83: #{gmlp_language_model.2} parent=79 // pred_region
          %s1056 = smul.u32 2, %s29
          %p1057 = scmp.lt.s32.totalorder %s1056, 3
          %s1058 = scalar_select %p1057, %s1056, 3
          %s1059 = smul.addr %s1058, 2
          %s1060 = smul.addr %s1059, 8
          %s1061 = scalar_lea.vmem %s11, %s1060
        $region84: #{gmlp_language_model.2} parent=79 // pred_fallthru
          _
      $region80: #{gmlp_language_model.2} parent=5 // pred_fallthru
        _
    $region6: #{gmlp_language_model.2} parent=1 // loop_footer
      %s22 = sadd.s32 1, %s18
    $region7: #{gmlp_language_model.2} parent=1 // loop_footer_branch
      %17 = sbr.rel target = $region3
    $region8: #{gmlp_language_model.2} parent=1 // loop_exit
      _
    %1062 = vsyncpa [#allocation3], 1
    %s1063 = scalar_lea.sflag [#allocation3], 1
    %1064 = vsyncpa %s1063, 1

</llo_original>
